<compile_context>
chip_gen: v7x
topology: tpu7x:2x2x1
jax: 0.10.0
libtpu: 0.0.40
codegen_flags: <defaults>
</compile_context>

<pallas_src>
import jax
import jax.numpy as jnp
from jax import lax
from jax.experimental import pallas as pl
from jax.experimental.pallas import tpu as pltpu

_EPS = 1e-12  # guards zero-norm rows (incl. zero-padded batch rows)


def _encode_branch(views, w, tb, v, d):
    """views: (TB*V, F) bf16, w: (F, D) bf16 -> (TB, D) f32 normalized mean feature."""
    # Single big MXU matmul with f32 accumulation.
    feats = jnp.dot(views, w, preferred_element_type=jnp.float32)      # (TB*V, D)
    # Per-view L2 normalize: rsqrt (EUP) + multiply (VALU) instead of sqrt+divide.
    sumsq = jnp.sum(feats * feats, axis=-1, keepdims=True)             # (TB*V, 1)
    feats = feats * lax.rsqrt(sumsq + _EPS)
    # Mean over the V views of each object (sublane-group reduce), then final L2 norm.
    mean = jnp.mean(feats.reshape(tb, v, d), axis=1)                   # (TB, D)
    msumsq = jnp.sum(mean * mean, axis=-1, keepdims=True)              # (TB, 1)
    return mean * lax.rsqrt(msumsq + _EPS)


def opendlign_kernel(depth_ref, rgb_ref, w_depth_ref, w_rgb_ref,
                     feat_a_ref, feat_b_ref):
    # depth_ref / rgb_ref: (TB*V, F) bf16 ; w_*_ref: (F, D) bf16 ; outputs: (TB, D) f32
    tb, d = feat_a_ref.shape
    v = depth_ref.shape[0] // tb
    feat_a_ref[...] = _encode_branch(depth_ref[...], w_depth_ref[...], tb, v, d)  # depth
    feat_b_ref[...] = _encode_branch(rgb_ref[...], w_rgb_ref[...], tb, v, d)      # rgb


def _pick_batch_tile(b):
    # Sublane-dense batch tile (multiple of 8); TB*V rows fill the MXU M dim.
    for tb in (64, 32, 16, 8):
        if b >= tb:
            return tb
    return 8


def opendlign_forward(rgb, depth, w_rgb, w_depth, logit_scale):
    """rgb, depth: (B, V, C, H, W) float32.  Returns dict like the nn.Module."""
    B, V, C, H, W = rgb.shape
    F = C * H * W
    D = w_rgb.shape[1]

    TB = _pick_batch_tile(B)
    B_pad = pl.cdiv(B, TB) * TB
    grid = (B_pad // TB,)

    def prep(x):
        # Flatten views in the wrapper: (B, V, C, H, W) -> (B*V, F) bf16.
        # Keeps the kernel slab 2-D so no in-kernel reshape/copy is needed.
        x = x.reshape(B, V, F).astype(jnp.bfloat16)
        if B_pad != B:
            x = jnp.pad(x, ((0, B_pad - B), (0, 0), (0, 0)))
        return x.reshape(B_pad * V, F)

    depth_flat = prep(depth)
    rgb_flat = prep(rgb)
    w_depth_bf = w_depth.astype(jnp.bfloat16)
    w_rgb_bf = w_rgb.astype(jnp.bfloat16)

    cost = pl.CostEstimate(
        flops=2 * 2 * B_pad * V * F * D,                       # two branches
        transcendentals=2 * B_pad * (V + 1),                   # rsqrt per view + per mean
        bytes_accessed=(2 * B_pad * V * F * 2                  # bf16 view slabs
                        + 2 * F * D * 2                        # bf16 weights
                        + 2 * B_pad * D * 4),                  # f32 outputs
    )

    grid_spec = pltpu.PrefetchScalarGridSpec(
        num_scalar_prefetch=0,
        grid=grid,
        in_specs=[
            pl.BlockSpec((TB * V, F), lambda i: (i, 0)),       # depth views tile
            pl.BlockSpec((TB * V, F), lambda i: (i, 0)),       # rgb views tile
            pl.BlockSpec((F, D), lambda i: (0, 0)),            # constant -> DMA'd once
            pl.BlockSpec((F, D), lambda i: (0, 0)),
        ],
        out_specs=[
            pl.BlockSpec((TB, D), lambda i: (i, 0)),           # sublane/lane-dense
            pl.BlockSpec((TB, D), lambda i: (i, 0)),
        ],
    )

    feat_a, feat_b = pl.pallas_call(
        opendlign_kernel,
        out_shape=(jax.ShapeDtypeStruct((B_pad, D), jnp.float32),
                   jax.ShapeDtypeStruct((B_pad, D), jnp.float32)),
        grid_spec=grid_spec,
        compiler_params=pltpu.CompilerParams(
            dimension_semantics=("parallel",)),
        cost_estimate=cost,
    )(depth_flat, rgb_flat, w_depth_bf, w_rgb_bf)

    return {
        "feature_A": feat_a[:B],
        "feature_B": feat_b[:B],
        "logit_scale": jnp.exp(logit_scale),
    }


def _reference(rgb, depth, w_rgb, w_depth):
    """Pure-JAX f32 reference mirroring the PyTorch loop."""
    B, V = rgb.shape[:2]

    def branch(x, w):
        f = jnp.einsum("bvf,fd->bvd", x.reshape(B, V, -1).astype(jnp.float32), w)
        f = f / jnp.linalg.norm(f, axis=-1, keepdims=True)
        m = f.mean(axis=1)
        return m / jnp.linalg.norm(m, axis=-1, keepdims=True)

    return branch(depth, w_depth), branch(rgb, w_rgb)


if __name__ == "__main__":
    key = jax.random.PRNGKey(0)
    k_rgb, k_depth, k_wr, k_wd = jax.random.split(key, 4)

    B, V, C, H, W = 2, 8, 4, 16, 16     # batch of objects, 8 views each
    F = C * H * W                       # 1024 flattened image features
    D = 128                             # embedding dim (lane-dense)

    rgb = jax.random.normal(k_rgb, (B, V, C, H, W), dtype=jnp.float32)
    depth = jax.random.normal(k_depth, (B, V, C, H, W), dtype=jnp.float32)

    # Deterministic synthetic encoder weights (one projection per branch).
    w_rgb = jax.random.normal(k_wr, (F, D), dtype=jnp.float32) * 0.02
    w_depth = jax.random.normal(k_wd, (F, D), dtype=jnp.float32) * 0.02

    # CLIP-style logit scale parameter: log(1/0.07).
    logit_scale = jnp.asarray(jnp.log(1.0 / 0.07), dtype=jnp.float32)

    out = opendlign_forward(rgb, depth, w_rgb, w_depth, logit_scale)
    jax.block_until_ready(out)

    assert out["feature_A"].shape == (B, D)
    assert out["feature_B"].shape == (B, D)
    assert out["logit_scale"].shape == ()

    # Numeric check vs f32 reference (loose tolerance: bf16 matmul operands).
    ref_a, ref_b = _reference(rgb, depth, w_rgb, w_depth)
    assert bool(jnp.allclose(out["feature_A"], ref_a, atol=2e-2))
    assert bool(jnp.allclose(out["feature_B"], ref_b, atol=2e-2))
    # Output rows must be unit-norm (final normalize done in f32).
    assert bool(jnp.allclose(jnp.linalg.norm(out["feature_A"], axis=-1), 1.0, atol=1e-3))
    assert bool(jnp.allclose(jnp.linalg.norm(out["feature_B"], axis=-1), 1.0, atol=1e-3))

    print("KERNEL_OK")
</pallas_src>

<mosaic_0001>
module attributes {stable_mosaic.version = 11 : i64} {
  func.func @opendlign_kernel(%arg0: i32, %arg1: memref<64x1024xbf16, #tpu.memory_space<vmem>>, %arg2: memref<64x1024xbf16, #tpu.memory_space<vmem>>, %arg3: memref<1024x128xbf16, #tpu.memory_space<vmem>>, %arg4: memref<1024x128xbf16, #tpu.memory_space<vmem>>, %arg5: memref<8x128xf32, #tpu.memory_space<vmem>>, %arg6: memref<8x128xf32, #tpu.memory_space<vmem>>) attributes {dimension_semantics = [#tpu.dimension_semantics<parallel>], iteration_bounds = array<i64: 1>, scalar_prefetch = 0 : i64, scratch_operands = 0 : i64, tpu.core_type = #tpu.core_type<tc>, window_params = [{transform_indices = @transform_0, window_bounds = array<i64: 64, 1024>}, {transform_indices = @transform_1, window_bounds = array<i64: 64, 1024>}, {pipeline_mode = #tpu.pipeline_mode<synchronous>, transform_indices = @transform_2, window_bounds = array<i64: 1024, 128>}, {pipeline_mode = #tpu.pipeline_mode<synchronous>, transform_indices = @transform_3, window_bounds = array<i64: 1024, 128>}, {transform_indices = @transform_4, window_bounds = array<i64: 8, 128>}, {transform_indices = @transform_5, window_bounds = array<i64: 8, 128>}]} {
    %c0 = arith.constant 0 : index
    %c0_0 = arith.constant 0 : index
    %0 = vector.load %arg1[%c0, %c0_0] : memref<64x1024xbf16, #tpu.memory_space<vmem>>, vector<64x1024xbf16>
    %c0_1 = arith.constant 0 : index
    %c0_2 = arith.constant 0 : index
    %1 = vector.load %arg3[%c0_1, %c0_2] : memref<1024x128xbf16, #tpu.memory_space<vmem>>, vector<1024x128xbf16>
    %cst = arith.constant dense<0.000000e+00> : vector<64x128xf32>
    %2 = tpu.matmul %0, %1, %cst {dimension_numbers = #tpu.dot_dimension_numbers<[1], [0], [0], [1], [0, 0, 1, 1], [], []>} : vector<64x1024xbf16>, vector<1024x128xbf16>, vector<64x128xf32> -> vector<64x128xf32>
    %3 = arith.mulf %2, %2 : vector<64x128xf32>
    %cst_3 = arith.constant dense<0.000000e+00> : vector<64xf32>
    %4 = vector.multi_reduction <add>, %3, %cst_3 [1] : vector<64x128xf32> to vector<64xf32>
    %5 = vector.shape_cast %4 : vector<64xf32> to vector<64x1xf32>
    %cst_4 = arith.constant 9.99999996E-13 : f32
    %6 = vector.broadcast %cst_4 : f32 to vector<64x1xf32>
    %7 = arith.addf %5, %6 : vector<64x1xf32>
    %8 = math.rsqrt %7 : vector<64x1xf32>
    %9 = vector.broadcast %8 : vector<64x1xf32> to vector<64x128xf32>
    %10 = arith.mulf %2, %9 : vector<64x128xf32>
    %11 = vector.shape_cast %10 : vector<64x128xf32> to vector<8x8x128xf32>
    %cst_5 = arith.constant dense<0.000000e+00> : vector<8x128xf32>
    %12 = vector.multi_reduction <add>, %11, %cst_5 [1] : vector<8x8x128xf32> to vector<8x128xf32>
    %cst_6 = arith.constant 8.000000e+00 : f32
    %13 = vector.broadcast %cst_6 : f32 to vector<8x128xf32>
    %14 = arith.divf %12, %13 : vector<8x128xf32>
    %15 = arith.mulf %14, %14 : vector<8x128xf32>
    %cst_7 = arith.constant dense<0.000000e+00> : vector<8xf32>
    %16 = vector.multi_reduction <add>, %15, %cst_7 [1] : vector<8x128xf32> to vector<8xf32>
    %17 = vector.shape_cast %16 : vector<8xf32> to vector<8x1xf32>
    %cst_8 = arith.constant 9.99999996E-13 : f32
    %18 = vector.broadcast %cst_8 : f32 to vector<8x1xf32>
    %19 = arith.addf %17, %18 : vector<8x1xf32>
    %20 = math.rsqrt %19 : vector<8x1xf32>
    %21 = vector.broadcast %20 : vector<8x1xf32> to vector<8x128xf32>
    %22 = arith.mulf %14, %21 : vector<8x128xf32>
    %c0_9 = arith.constant 0 : index
    %c0_10 = arith.constant 0 : index
    %23 = vector.load %arg5[%c0_9, %c0_10] : memref<8x128xf32, #tpu.memory_space<vmem>>, vector<8x128xf32>
    tpu.vector_store %arg5[%c0_9, %c0_10], %22 {strides = array<i32>} : memref<8x128xf32, #tpu.memory_space<vmem>>, vector<8x128xf32>,
    %c0_11 = arith.constant 0 : index
    %c0_12 = arith.constant 0 : index
    %24 = vector.load %arg2[%c0_11, %c0_12] : memref<64x1024xbf16, #tpu.memory_space<vmem>>, vector<64x1024xbf16>
    %c0_13 = arith.constant 0 : index
    %c0_14 = arith.constant 0 : index
    %25 = vector.load %arg4[%c0_13, %c0_14] : memref<1024x128xbf16, #tpu.memory_space<vmem>>, vector<1024x128xbf16>
    %cst_15 = arith.constant dense<0.000000e+00> : vector<64x128xf32>
    %26 = tpu.matmul %24, %25, %cst_15 {dimension_numbers = #tpu.dot_dimension_numbers<[1], [0], [0], [1], [0, 0, 1, 1], [], []>} : vector<64x1024xbf16>, vector<1024x128xbf16>, vector<64x128xf32> -> vector<64x128xf32>
    %27 = arith.mulf %26, %26 : vector<64x128xf32>
    %cst_16 = arith.constant dense<0.000000e+00> : vector<64xf32>
    %28 = vector.multi_reduction <add>, %27, %cst_16 [1] : vector<64x128xf32> to vector<64xf32>
    %29 = vector.shape_cast %28 : vector<64xf32> to vector<64x1xf32>
    %cst_17 = arith.constant 9.99999996E-13 : f32
    %30 = vector.broadcast %cst_17 : f32 to vector<64x1xf32>
    %31 = arith.addf %29, %30 : vector<64x1xf32>
    %32 = math.rsqrt %31 : vector<64x1xf32>
    %33 = vector.broadcast %32 : vector<64x1xf32> to vector<64x128xf32>
    %34 = arith.mulf %26, %33 : vector<64x128xf32>
    %35 = vector.shape_cast %34 : vector<64x128xf32> to vector<8x8x128xf32>
    %cst_18 = arith.constant dense<0.000000e+00> : vector<8x128xf32>
    %36 = vector.multi_reduction <add>, %35, %cst_18 [1] : vector<8x8x128xf32> to vector<8x128xf32>
    %cst_19 = arith.constant 8.000000e+00 : f32
    %37 = vector.broadcast %cst_19 : f32 to vector<8x128xf32>
    %38 = arith.divf %36, %37 : vector<8x128xf32>
    %39 = arith.mulf %38, %38 : vector<8x128xf32>
    %cst_20 = arith.constant dense<0.000000e+00> : vector<8xf32>
    %40 = vector.multi_reduction <add>, %39, %cst_20 [1] : vector<8x128xf32> to vector<8xf32>
    %41 = vector.shape_cast %40 : vector<8xf32> to vector<8x1xf32>
    %cst_21 = arith.constant 9.99999996E-13 : f32
    %42 = vector.broadcast %cst_21 : f32 to vector<8x1xf32>
    %43 = arith.addf %41, %42 : vector<8x1xf32>
    %44 = math.rsqrt %43 : vector<8x1xf32>
    %45 = vector.broadcast %44 : vector<8x1xf32> to vector<8x128xf32>
    %46 = arith.mulf %38, %45 : vector<8x128xf32>
    %c0_22 = arith.constant 0 : index
    %c0_23 = arith.constant 0 : index
    %47 = vector.load %arg6[%c0_22, %c0_23] : memref<8x128xf32, #tpu.memory_space<vmem>>, vector<8x128xf32>
    tpu.vector_store %arg6[%c0_22, %c0_23], %46 {strides = array<i32>} : memref<8x128xf32, #tpu.memory_space<vmem>>, vector<8x128xf32>,
    return
  }
  func.func @transform_0(%arg0: i32) -> (i32, i32) {
    %c0_i32 = arith.constant 0 : i32
    %c0_i32_0 = arith.constant 0 : i32
    return %arg0, %c0_i32 : i32, i32
  }
  func.func @transform_1(%arg0: i32) -> (i32, i32) {
    %c0_i32 = arith.constant 0 : i32
    %c0_i32_0 = arith.constant 0 : i32
    return %arg0, %c0_i32 : i32, i32
  }
  func.func @transform_2(%arg0: i32) -> (i32, i32) {
    %c0_i32 = arith.constant 0 : i32
    %c0_i32_0 = arith.constant 0 : i32
    %c0_i32_1 = arith.constant 0 : i32
    return %c0_i32, %c0_i32_0 : i32, i32
  }
  func.func @transform_3(%arg0: i32) -> (i32, i32) {
    %c0_i32 = arith.constant 0 : i32
    %c0_i32_0 = arith.constant 0 : i32
    %c0_i32_1 = arith.constant 0 : i32
    return %c0_i32, %c0_i32_0 : i32, i32
  }
  func.func @transform_4(%arg0: i32) -> (i32, i32) {
    %c0_i32 = arith.constant 0 : i32
    %c0_i32_0 = arith.constant 0 : i32
    return %arg0, %c0_i32 : i32, i32
  }
  func.func @transform_5(%arg0: i32) -> (i32, i32) {
    %c0_i32 = arith.constant 0 : i32
    %c0_i32_0 = arith.constant 0 : i32
    return %arg0, %c0_i32 : i32, i32
  }
}

</mosaic_0001>

<llo_original>
// kernel: tpu_custom_call.1
$region0: #{tpu_custom_call.1}
  #allocation0 [shape = 'u32[]', space=smem, size = 0x4, offset = 0x4, fixed_abs, tag = 'smem constant byte address 0x4 - core index']
  #allocation1 [shape = 'u32[144,128]{1,0:T(1,128)}', space=vmem, size = 0x12000, scoped, tag = 'internal scratch']
  %s0 = inlined_call_operand.hbm [shape: bf16[64,1024], index: 0, kind: input, shape index: {}]
  %s1 = inlined_call_operand.hbm [shape: bf16[64,1024], index: 1, kind: input, shape index: {}]
  %s2 = inlined_call_operand.hbm [shape: bf16[1024,128], index: 2, kind: input, shape index: {}]
  %s3 = inlined_call_operand.hbm [shape: bf16[1024,128], index: 3, kind: input, shape index: {}]
  %s4 = inlined_call_operand.hbm [shape: f32[8,128], index: 4, kind: output, shape index: {0}]
  %s5 = inlined_call_operand.hbm [shape: f32[8,128], index: 5, kind: output, shape index: {1}]
  %6 = xla_tuple %s4, %s5
  %s7 = sld [smem:[#allocation0]]
  $region50: #{tpu_custom_call.1} parent=0
    _
  %s9 = ssub.s32 1, %s7
  %s10 = scalar_select 0, %s9, %s7
  $region1: #{tpu_custom_call.1} parent=0
    #allocation2 [shape = 'u8[131072]{0}', space=vmem, size = 0x20000, scoped, tag = 'input window, operand 0, single buffered']
    #allocation3 [shape = 's32[1]{0}', space=sflag, size = 0x4, scoped, tag = 'scoped memory for tpu_custom_call.1']
    #allocation4 [shape = 's32[1]{0}', space=sflag, size = 0x4, scoped, tag = 'scoped memory for tpu_custom_call.1']
    #allocation5 [shape = 'u8[131072]{0}', space=vmem, size = 0x20000, scoped, tag = 'input window, operand 1, single buffered']
    #allocation6 [shape = 's32[1]{0}', space=sflag, size = 0x4, scoped, tag = 'scoped memory for tpu_custom_call.1']
    #allocation7 [shape = 'u8[262144]{0}', space=vmem, size = 0x40000, scoped, tag = 'input window, operand 2, single buffered']
    #allocation8 [shape = 'u8[262144]{0}', space=vmem, size = 0x40000, scoped, tag = 'input window, operand 3, single buffered']
    #allocation9 [shape = 's32[1]{0}', space=sflag, size = 0x4, scoped, tag = 'scoped memory for tpu_custom_call.1']
    #allocation10 [shape = 'u8[4096]{0}', space=vmem, size = 0x1000, scoped, tag = 'output window, operand 0, single buffered']
    #allocation11 [shape = 'u8[4096]{0}', space=vmem, size = 0x1000, scoped, tag = 'output window, operand 1, single buffered']
    #allocation12 [shape = 's32[1]{0}', space=sflag, size = 0x4, scoped, tag = 'scoped memory for tpu_custom_call.1']
    %11 = vsyncpa [#allocation3], 0
    %12 = vsyncpa [#allocation6], 0
    %13 = vsyncpa [#allocation9], 0
    %14 = vsyncpa [#allocation4], 0
    %15 = vsyncpa [#allocation12], 0
    // Predicated region
    $region2: #{tpu_custom_call.1} parent=1 // pred_check
      _
    $region3: #{tpu_custom_call.1} parent=1 // pred_check_branch
      %17 = sbr.rel (0) target = $region5
    $region4: #{tpu_custom_call.1} parent=1 // pred_region
      %s19 = ssub.s32 4096, 4096
      %20 = vsyncadd [#allocation3], %s19
      %s21 = sshll.u32 [#allocation2], 4
      %s22 = int_to_ptr.vmem [resolvable:$true] %s21
      %27 = dma.hbm_to_vmem [thread:$0]  %s0, 4096, %s22, [#allocation3], 512, 512, 32
    $region5: #{tpu_custom_call.1} parent=1 // pred_fallthru
      _
    // Predicated region
    $region6: #{tpu_custom_call.1} parent=1 // pred_check
      _
    $region7: #{tpu_custom_call.1} parent=1 // pred_check_branch
      %29 = sbr.rel (0) target = $region9
    $region8: #{tpu_custom_call.1} parent=1 // pred_region
      %s31 = ssub.s32 4096, 4096
      %32 = vsyncadd [#allocation6], %s31
      %s33 = sshll.u32 [#allocation5], 4
      %s34 = int_to_ptr.vmem [resolvable:$true] %s33
      %39 = dma.hbm_to_vmem [thread:$0]  %s1, 4096, %s34, [#allocation6], 512, 512, 32
    $region9: #{tpu_custom_call.1} parent=1 // pred_fallthru
      _
    // Predicated region
    $region10: #{tpu_custom_call.1} parent=1 // pred_check
      _
    $region11: #{tpu_custom_call.1} parent=1 // pred_check_branch
      %41 = sbr.rel (0) target = $region13
    $region12: #{tpu_custom_call.1} parent=1 // pred_region
      %s43 = ssub.s32 8192, 8192
      %44 = vsyncadd [#allocation6], %s43
      %s45 = sshll.u32 [#allocation7], 4
      %s46 = int_to_ptr.vmem [resolvable:$true] %s45
      %51 = dma.hbm_to_vmem [thread:$0]  %s2, 8192, %s46, [#allocation6], 64, 64, 4
    $region13: #{tpu_custom_call.1} parent=1 // pred_fallthru
      _
    // Predicated region
    $region14: #{tpu_custom_call.1} parent=1 // pred_check
      _
    $region15: #{tpu_custom_call.1} parent=1 // pred_check_branch
      %53 = sbr.rel (0) target = $region17
    $region16: #{tpu_custom_call.1} parent=1 // pred_region
      %s55 = ssub.s32 8192, 8192
      %56 = vsyncadd [#allocation9], %s55
      %s57 = sshll.u32 [#allocation8], 4
      %s58 = int_to_ptr.vmem [resolvable:$true] %s57
      %63 = dma.hbm_to_vmem [thread:$0]  %s3, 8192, %s58, [#allocation9], 64, 64, 4
    $region17: #{tpu_custom_call.1} parent=1 // pred_fallthru
      _
    // Predicated region
    $region18: #{tpu_custom_call.1} parent=1 // pred_check
      _
    $region19: #{tpu_custom_call.1} parent=1 // pred_check_branch
      %65 = sbr.rel (0) target = $region21
    $region20: #{tpu_custom_call.1} parent=1 // pred_region
      %66 = dma.done [#allocation3], 4096
    $region21: #{tpu_custom_call.1} parent=1 // pred_fallthru
      _
    // Predicated region
    $region22: #{tpu_custom_call.1} parent=1 // pred_check
      _
    $region23: #{tpu_custom_call.1} parent=1 // pred_check_branch
      %68 = sbr.rel (0) target = $region25
    $region24: #{tpu_custom_call.1} parent=1 // pred_region
      %69 = dma.done [#allocation6], 4096
    $region25: #{tpu_custom_call.1} parent=1 // pred_fallthru
      _
    // Predicated region
    $region26: #{tpu_custom_call.1} parent=1 // pred_check
      _
    $region27: #{tpu_custom_call.1} parent=1 // pred_check_branch
      %71 = sbr.rel (0) target = $region29
    $region28: #{tpu_custom_call.1} parent=1 // pred_region
      %72 = dma.done [#allocation6], 8192
    $region29: #{tpu_custom_call.1} parent=1 // pred_fallthru
      _
    // Predicated region
    $region30: #{tpu_custom_call.1} parent=1 // pred_check
      _
    $region31: #{tpu_custom_call.1} parent=1 // pred_check_branch
      %74 = sbr.rel (0) target = $region33
    $region32: #{tpu_custom_call.1} parent=1 // pred_region
      %75 = dma.done [#allocation9], 8192
    $region33: #{tpu_custom_call.1} parent=1 // pred_fallthru
      _
    %v77 = vld [vmem:[#allocation2] sm:$0xff]
    %v78 = vld [vmem:[#allocation2 + $0x8] sm:$0xff]
    %v79 = vld [vmem:[#allocation2 + $0x10] sm:$0xff]
    %v80 = vld [vmem:[#allocation2 + $0x18] sm:$0xff]
    %v81 = vld [vmem:[#allocation2 + $0x20] sm:$0xff]
    %v82 = vld [vmem:[#allocation2 + $0x28] sm:$0xff]
    %v83 = vld [vmem:[#allocation2 + $0x30] sm:$0xff]
    %v84 = vld [vmem:[#allocation2 + $0x38] sm:$0xff]
    %v85 = vld [vmem:[#allocation2 + $0x40] sm:$0xff]
    %v86 = vld [vmem:[#allocation2 + $0x48] sm:$0xff]
    %v87 = vld [vmem:[#allocation2 + $0x50] sm:$0xff]
    %v88 = vld [vmem:[#allocation2 + $0x58] sm:$0xff]
    %v89 = vld [vmem:[#allocation2 + $0x60] sm:$0xff]
    %v90 = vld [vmem:[#allocation2 + $0x68] sm:$0xff]
    %v91 = vld [vmem:[#allocation2 + $0x70] sm:$0xff]
    %v92 = vld [vmem:[#allocation2 + $0x78] sm:$0xff]
    %v93 = vld [vmem:[#allocation2 + $0x80] sm:$0xff]
    %v94 = vld [vmem:[#allocation2 + $0x88] sm:$0xff]
    %v95 = vld [vmem:[#allocation2 + $0x90] sm:$0xff]
    %v96 = vld [vmem:[#allocation2 + $0x98] sm:$0xff]
    %v97 = vld [vmem:[#allocation2 + $0xa0] sm:$0xff]
    %v98 = vld [vmem:[#allocation2 + $0xa8] sm:$0xff]
    %v99 = vld [vmem:[#allocation2 + $0xb0] sm:$0xff]
    %v100 = vld [vmem:[#allocation2 + $0xb8] sm:$0xff]
    %v101 = vld [vmem:[#allocation2 + $0xc0] sm:$0xff]
    %v102 = vld [vmem:[#allocation2 + $0xc8] sm:$0xff]
    %v103 = vld [vmem:[#allocation2 + $0xd0] sm:$0xff]
    %v104 = vld [vmem:[#allocation2 + $0xd8] sm:$0xff]
    %v105 = vld [vmem:[#allocation2 + $0xe0] sm:$0xff]
    %v106 = vld [vmem:[#allocation2 + $0xe8] sm:$0xff]
    %v107 = vld [vmem:[#allocation2 + $0xf0] sm:$0xff]
    %v108 = vld [vmem:[#allocation2 + $0xf8] sm:$0xff]
    %v109 = vld [vmem:[#allocation7] sm:$0xf]
    %v110 = vld [vmem:[#allocation7 + $0x4] sm:$0xf]
    %v111 = vld [vmem:[#allocation7 + $0x8] sm:$0xf]
    %v112 = vld [vmem:[#allocation7 + $0xc] sm:$0xf]
    %v113 = vld [vmem:[#allocation7 + $0x10] sm:$0xf]
    %v114 = vld [vmem:[#allocation7 + $0x14] sm:$0xf]
    %v115 = vld [vmem:[#allocation7 + $0x18] sm:$0xf]
    %v116 = vld [vmem:[#allocation7 + $0x1c] sm:$0xf]
    %v117 = vld [vmem:[#allocation7 + $0x20] sm:$0xf]
    %v118 = vld [vmem:[#allocation7 + $0x24] sm:$0xf]
    %v119 = vld [vmem:[#allocation7 + $0x28] sm:$0xf]
    %v120 = vld [vmem:[#allocation7 + $0x2c] sm:$0xf]
    %v121 = vld [vmem:[#allocation7 + $0x30] sm:$0xf]
    %v122 = vld [vmem:[#allocation7 + $0x34] sm:$0xf]
    %v123 = vld [vmem:[#allocation7 + $0x38] sm:$0xf]
    %v124 = vld [vmem:[#allocation7 + $0x3c] sm:$0xf]
    %v125 = vld [vmem:[#allocation7 + $0x40] sm:$0xf]
    %v126 = vld [vmem:[#allocation7 + $0x44] sm:$0xf]
    %v127 = vld [vmem:[#allocation7 + $0x48] sm:$0xf]
    %v128 = vld [vmem:[#allocation7 + $0x4c] sm:$0xf]
    %v129 = vld [vmem:[#allocation7 + $0x50] sm:$0xf]
    %v130 = vld [vmem:[#allocation7 + $0x54] sm:$0xf]
    %v131 = vld [vmem:[#allocation7 + $0x58] sm:$0xf]
    %v132 = vld [vmem:[#allocation7 + $0x5c] sm:$0xf]
    %v133 = vld [vmem:[#allocation7 + $0x60] sm:$0xf]
    %v134 = vld [vmem:[#allocation7 + $0x64] sm:$0xf]
    %v135 = vld [vmem:[#allocation7 + $0x68] sm:$0xf]
    %v136 = vld [vmem:[#allocation7 + $0x6c] sm:$0xf]
    %v137 = vld [vmem:[#allocation7 + $0x70] sm:$0xf]
    %v138 = vld [vmem:[#allocation7 + $0x74] sm:$0xf]
    %v139 = vld [vmem:[#allocation7 + $0x78] sm:$0xf]
    %v140 = vld [vmem:[#allocation7 + $0x7c] sm:$0xf]
    %v141 = vld [vmem:[#allocation7 + $0x80] sm:$0xf]
    %v142 = vld [vmem:[#allocation7 + $0x84] sm:$0xf]
    %v143 = vld [vmem:[#allocation7 + $0x88] sm:$0xf]
    %v144 = vld [vmem:[#allocation7 + $0x8c] sm:$0xf]
    %v145 = vld [vmem:[#allocation7 + $0x90] sm:$0xf]
    %v146 = vld [vmem:[#allocation7 + $0x94] sm:$0xf]
    %v147 = vld [vmem:[#allocation7 + $0x98] sm:$0xf]
    %v148 = vld [vmem:[#allocation7 + $0x9c] sm:$0xf]
    %v149 = vld [vmem:[#allocation7 + $0xa0] sm:$0xf]
    %v150 = vld [vmem:[#allocation7 + $0xa4] sm:$0xf]
    %v151 = vld [vmem:[#allocation7 + $0xa8] sm:$0xf]
    %v152 = vld [vmem:[#allocation7 + $0xac] sm:$0xf]
    %v153 = vld [vmem:[#allocation7 + $0xb0] sm:$0xf]
    %v154 = vld [vmem:[#allocation7 + $0xb4] sm:$0xf]
    %v155 = vld [vmem:[#allocation7 + $0xb8] sm:$0xf]
    %v156 = vld [vmem:[#allocation7 + $0xbc] sm:$0xf]
    %v157 = vld [vmem:[#allocation7 + $0xc0] sm:$0xf]
    %v158 = vld [vmem:[#allocation7 + $0xc4] sm:$0xf]
    %v159 = vld [vmem:[#allocation7 + $0xc8] sm:$0xf]
    %v160 = vld [vmem:[#allocation7 + $0xcc] sm:$0xf]
    %v161 = vld [vmem:[#allocation7 + $0xd0] sm:$0xf]
    %v162 = vld [vmem:[#allocation7 + $0xd4] sm:$0xf]
    %v163 = vld [vmem:[#allocation7 + $0xd8] sm:$0xf]
    %v164 = vld [vmem:[#allocation7 + $0xdc] sm:$0xf]
    %v165 = vld [vmem:[#allocation7 + $0xe0] sm:$0xf]
    %v166 = vld [vmem:[#allocation7 + $0xe4] sm:$0xf]
    %v167 = vld [vmem:[#allocation7 + $0xe8] sm:$0xf]
    %v168 = vld [vmem:[#allocation7 + $0xec] sm:$0xf]
    %v169 = vld [vmem:[#allocation7 + $0xf0] sm:$0xf]
    %v170 = vld [vmem:[#allocation7 + $0xf4] sm:$0xf]
    %v171 = vld [vmem:[#allocation7 + $0xf8] sm:$0xf]
    %v172 = vld [vmem:[#allocation7 + $0xfc] sm:$0xf]
    %v173 = vld [vmem:[#allocation7 + $0x100] sm:$0xf]
    %v174 = vld [vmem:[#allocation7 + $0x104] sm:$0xf]
    %v175 = vld [vmem:[#allocation7 + $0x108] sm:$0xf]
    %v176 = vld [vmem:[#allocation7 + $0x10c] sm:$0xf]
    %v177 = vld [vmem:[#allocation7 + $0x110] sm:$0xf]
    %v178 = vld [vmem:[#allocation7 + $0x114] sm:$0xf]
    %v179 = vld [vmem:[#allocation7 + $0x118] sm:$0xf]
    %v180 = vld [vmem:[#allocation7 + $0x11c] sm:$0xf]
    %v181 = vld [vmem:[#allocation7 + $0x120] sm:$0xf]
    %v182 = vld [vmem:[#allocation7 + $0x124] sm:$0xf]
    %v183 = vld [vmem:[#allocation7 + $0x128] sm:$0xf]
    %v184 = vld [vmem:[#allocation7 + $0x12c] sm:$0xf]
    %v185 = vld [vmem:[#allocation7 + $0x130] sm:$0xf]
    %v186 = vld [vmem:[#allocation7 + $0x134] sm:$0xf]
    %v187 = vld [vmem:[#allocation7 + $0x138] sm:$0xf]
    %v188 = vld [vmem:[#allocation7 + $0x13c] sm:$0xf]
    %v189 = vld [vmem:[#allocation7 + $0x140] sm:$0xf]
    %v190 = vld [vmem:[#allocation7 + $0x144] sm:$0xf]
    %v191 = vld [vmem:[#allocation7 + $0x148] sm:$0xf]
    %v192 = vld [vmem:[#allocation7 + $0x14c] sm:$0xf]
    %v193 = vld [vmem:[#allocation7 + $0x150] sm:$0xf]
    %v194 = vld [vmem:[#allocation7 + $0x154] sm:$0xf]
    %v195 = vld [vmem:[#allocation7 + $0x158] sm:$0xf]
    %v196 = vld [vmem:[#allocation7 + $0x15c] sm:$0xf]
    %v197 = vld [vmem:[#allocation7 + $0x160] sm:$0xf]
    %v198 = vld [vmem:[#allocation7 + $0x164] sm:$0xf]
    %v199 = vld [vmem:[#allocation7 + $0x168] sm:$0xf]
    %v200 = vld [vmem:[#allocation7 + $0x16c] sm:$0xf]
    %v201 = vld [vmem:[#allocation7 + $0x170] sm:$0xf]
    %v202 = vld [vmem:[#allocation7 + $0x174] sm:$0xf]
    %v203 = vld [vmem:[#allocation7 + $0x178] sm:$0xf]
    %v204 = vld [vmem:[#allocation7 + $0x17c] sm:$0xf]
    %v205 = vld [vmem:[#allocation7 + $0x180] sm:$0xf]
    %v206 = vld [vmem:[#allocation7 + $0x184] sm:$0xf]
    %v207 = vld [vmem:[#allocation7 + $0x188] sm:$0xf]
    %v208 = vld [vmem:[#allocation7 + $0x18c] sm:$0xf]
    %v209 = vld [vmem:[#allocation7 + $0x190] sm:$0xf]
    %v210 = vld [vmem:[#allocation7 + $0x194] sm:$0xf]
    %v211 = vld [vmem:[#allocation7 + $0x198] sm:$0xf]
    %v212 = vld [vmem:[#allocation7 + $0x19c] sm:$0xf]
    %v213 = vld [vmem:[#allocation7 + $0x1a0] sm:$0xf]
    %v214 = vld [vmem:[#allocation7 + $0x1a4] sm:$0xf]
    %v215 = vld [vmem:[#allocation7 + $0x1a8] sm:$0xf]
    %v216 = vld [vmem:[#allocation7 + $0x1ac] sm:$0xf]
    %v217 = vld [vmem:[#allocation7 + $0x1b0] sm:$0xf]
    %v218 = vld [vmem:[#allocation7 + $0x1b4] sm:$0xf]
    %v219 = vld [vmem:[#allocation7 + $0x1b8] sm:$0xf]
    %v220 = vld [vmem:[#allocation7 + $0x1bc] sm:$0xf]
    %v221 = vld [vmem:[#allocation7 + $0x1c0] sm:$0xf]
    %v222 = vld [vmem:[#allocation7 + $0x1c4] sm:$0xf]
    %v223 = vld [vmem:[#allocation7 + $0x1c8] sm:$0xf]
    %v224 = vld [vmem:[#allocation7 + $0x1cc] sm:$0xf]
    %v225 = vld [vmem:[#allocation7 + $0x1d0] sm:$0xf]
    %v226 = vld [vmem:[#allocation7 + $0x1d4] sm:$0xf]
    %v227 = vld [vmem:[#allocation7 + $0x1d8] sm:$0xf]
    %v228 = vld [vmem:[#allocation7 + $0x1dc] sm:$0xf]
    %v229 = vld [vmem:[#allocation7 + $0x1e0] sm:$0xf]
    %v230 = vld [vmem:[#allocation7 + $0x1e4] sm:$0xf]
    %v231 = vld [vmem:[#allocation7 + $0x1e8] sm:$0xf]
    %v232 = vld [vmem:[#allocation7 + $0x1ec] sm:$0xf]
    %v233 = vld [vmem:[#allocation7 + $0x1f0] sm:$0xf]
    %v234 = vld [vmem:[#allocation7 + $0x1f4] sm:$0xf]
    %v235 = vld [vmem:[#allocation7 + $0x1f8] sm:$0xf]
    %v236 = vld [vmem:[#allocation7 + $0x1fc] sm:$0xf]
    %v269 = vunpack.c.l.b16 %v77
    %v270 = vunpack.c.h.b16 %v77
    %v271 = vunpack.c.l.b16 %v78
    %v272 = vunpack.c.h.b16 %v78
    %v273 = vunpack.c.l.b16 %v79
    %v274 = vunpack.c.h.b16 %v79
    %v275 = vunpack.c.l.b16 %v80
    %v276 = vunpack.c.h.b16 %v80
    %v277 = vunpack.c.l.b16 %v81
    %v278 = vunpack.c.h.b16 %v81
    %v279 = vunpack.c.l.b16 %v82
    %v280 = vunpack.c.h.b16 %v82
    %v281 = vunpack.c.l.b16 %v83
    %v282 = vunpack.c.h.b16 %v83
    %v283 = vunpack.c.l.b16 %v84
    %v284 = vunpack.c.h.b16 %v84
    %v285 = vunpack.c.l.b16 %v85
    %v286 = vunpack.c.h.b16 %v85
    %v287 = vunpack.c.l.b16 %v86
    %v288 = vunpack.c.h.b16 %v86
    %v289 = vunpack.c.l.b16 %v87
    %v290 = vunpack.c.h.b16 %v87
    %v291 = vunpack.c.l.b16 %v88
    %v292 = vunpack.c.h.b16 %v88
    %v293 = vunpack.c.l.b16 %v89
    %v294 = vunpack.c.h.b16 %v89
    %v295 = vunpack.c.l.b16 %v90
    %v296 = vunpack.c.h.b16 %v90
    %v297 = vunpack.c.l.b16 %v91
    %v298 = vunpack.c.h.b16 %v91
    %v299 = vunpack.c.l.b16 %v92
    %v300 = vunpack.c.h.b16 %v92
    %v301 = vunpack.c.l.b16 %v93
    %v302 = vunpack.c.h.b16 %v93
    %v303 = vunpack.c.l.b16 %v94
    %v304 = vunpack.c.h.b16 %v94
    %v305 = vunpack.c.l.b16 %v95
    %v306 = vunpack.c.h.b16 %v95
    %v307 = vunpack.c.l.b16 %v96
    %v308 = vunpack.c.h.b16 %v96
    %v309 = vunpack.c.l.b16 %v97
    %v310 = vunpack.c.h.b16 %v97
    %v311 = vunpack.c.l.b16 %v98
    %v312 = vunpack.c.h.b16 %v98
    %v313 = vunpack.c.l.b16 %v99
    %v314 = vunpack.c.h.b16 %v99
    %v315 = vunpack.c.l.b16 %v100
    %v316 = vunpack.c.h.b16 %v100
    %v317 = vunpack.c.l.b16 %v101
    %v318 = vunpack.c.h.b16 %v101
    %v319 = vunpack.c.l.b16 %v102
    %v320 = vunpack.c.h.b16 %v102
    %v321 = vunpack.c.l.b16 %v103
    %v322 = vunpack.c.h.b16 %v103
    %v323 = vunpack.c.l.b16 %v104
    %v324 = vunpack.c.h.b16 %v104
    %v325 = vunpack.c.l.b16 %v105
    %v326 = vunpack.c.h.b16 %v105
    %v327 = vunpack.c.l.b16 %v106
    %v328 = vunpack.c.h.b16 %v106
    %v329 = vunpack.c.l.b16 %v107
    %v330 = vunpack.c.h.b16 %v107
    %v331 = vunpack.c.l.b16 %v108
    %v332 = vunpack.c.h.b16 %v108
    %v333 = vpack.c.b16 %v277, %v269
    %v334 = vpack.c.b16 %v278, %v270
    %v335 = vpack.c.b16 %v279, %v271
    %v336 = vpack.c.b16 %v280, %v272
    %v337 = vpack.c.b16 %v281, %v273
    %v338 = vpack.c.b16 %v282, %v274
    %v339 = vpack.c.b16 %v283, %v275
    %v340 = vpack.c.b16 %v284, %v276
    %v341 = vpack.c.b16 %v293, %v285
    %v342 = vpack.c.b16 %v294, %v286
    %v343 = vpack.c.b16 %v295, %v287
    %v344 = vpack.c.b16 %v296, %v288
    %v345 = vpack.c.b16 %v297, %v289
    %v346 = vpack.c.b16 %v298, %v290
    %v347 = vpack.c.b16 %v299, %v291
    %v348 = vpack.c.b16 %v300, %v292
    %v349 = vpack.c.b16 %v309, %v301
    %v350 = vpack.c.b16 %v310, %v302
    %v351 = vpack.c.b16 %v311, %v303
    %v352 = vpack.c.b16 %v312, %v304
    %v353 = vpack.c.b16 %v313, %v305
    %v354 = vpack.c.b16 %v314, %v306
    %v355 = vpack.c.b16 %v315, %v307
    %v356 = vpack.c.b16 %v316, %v308
    %v357 = vpack.c.b16 %v325, %v317
    %v358 = vpack.c.b16 %v326, %v318
    %v359 = vpack.c.b16 %v327, %v319
    %v360 = vpack.c.b16 %v328, %v320
    %v361 = vpack.c.b16 %v329, %v321
    %v362 = vpack.c.b16 %v330, %v322
    %v363 = vpack.c.b16 %v331, %v323
    %v364 = vpack.c.b16 %v332, %v324
    %v525 = vunpack.c.l.b16 %v109
    %v526 = vunpack.c.l.b16 %v110
    %v527 = vunpack.c.l.b16 %v111
    %v528 = vunpack.c.l.b16 %v112
    %v529 = vunpack.c.l.b16 %v113
    %v530 = vunpack.c.l.b16 %v114
    %v531 = vunpack.c.l.b16 %v115
    %v532 = vunpack.c.l.b16 %v116
    %v533 = vunpack.c.l.b16 %v117
    %v534 = vunpack.c.l.b16 %v118
    %v535 = vunpack.c.l.b16 %v119
    %v536 = vunpack.c.l.b16 %v120
    %v537 = vunpack.c.l.b16 %v121
    %v538 = vunpack.c.l.b16 %v122
    %v539 = vunpack.c.l.b16 %v123
    %v540 = vunpack.c.l.b16 %v124
    %v541 = vunpack.c.l.b16 %v125
    %v542 = vunpack.c.l.b16 %v126
    %v543 = vunpack.c.l.b16 %v127
    %v544 = vunpack.c.l.b16 %v128
    %v545 = vunpack.c.l.b16 %v129
    %v546 = vunpack.c.l.b16 %v130
    %v547 = vunpack.c.l.b16 %v131
    %v548 = vunpack.c.l.b16 %v132
    %v549 = vunpack.c.l.b16 %v133
    %v550 = vunpack.c.l.b16 %v134
    %v551 = vunpack.c.l.b16 %v135
    %v552 = vunpack.c.l.b16 %v136
    %v553 = vunpack.c.l.b16 %v137
    %v554 = vunpack.c.l.b16 %v138
    %v555 = vunpack.c.l.b16 %v139
    %v556 = vunpack.c.l.b16 %v140
    %v557 = vunpack.c.l.b16 %v141
    %v558 = vunpack.c.l.b16 %v142
    %v559 = vunpack.c.l.b16 %v143
    %v560 = vunpack.c.l.b16 %v144
    %v561 = vunpack.c.l.b16 %v145
    %v562 = vunpack.c.l.b16 %v146
    %v563 = vunpack.c.l.b16 %v147
    %v564 = vunpack.c.l.b16 %v148
    %v565 = vunpack.c.l.b16 %v149
    %v566 = vunpack.c.l.b16 %v150
    %v567 = vunpack.c.l.b16 %v151
    %v568 = vunpack.c.l.b16 %v152
    %v569 = vunpack.c.l.b16 %v153
    %v570 = vunpack.c.l.b16 %v154
    %v571 = vunpack.c.l.b16 %v155
    %v572 = vunpack.c.l.b16 %v156
    %v573 = vunpack.c.l.b16 %v157
    %v574 = vunpack.c.l.b16 %v158
    %v575 = vunpack.c.l.b16 %v159
    %v576 = vunpack.c.l.b16 %v160
    %v577 = vunpack.c.l.b16 %v161
    %v578 = vunpack.c.l.b16 %v162
    %v579 = vunpack.c.l.b16 %v163
    %v580 = vunpack.c.l.b16 %v164
    %v581 = vunpack.c.l.b16 %v165
    %v582 = vunpack.c.l.b16 %v166
    %v583 = vunpack.c.l.b16 %v167
    %v584 = vunpack.c.l.b16 %v168
    %v585 = vunpack.c.l.b16 %v169
    %v586 = vunpack.c.l.b16 %v170
    %v587 = vunpack.c.l.b16 %v171
    %v588 = vunpack.c.l.b16 %v172
    %v589 = vunpack.c.l.b16 %v173
    %v590 = vunpack.c.l.b16 %v174
    %v591 = vunpack.c.l.b16 %v175
    %v592 = vunpack.c.l.b16 %v176
    %v593 = vunpack.c.l.b16 %v177
    %v594 = vunpack.c.l.b16 %v178
    %v595 = vunpack.c.l.b16 %v179
    %v596 = vunpack.c.l.b16 %v180
    %v597 = vunpack.c.l.b16 %v181
    %v598 = vunpack.c.l.b16 %v182
    %v599 = vunpack.c.l.b16 %v183
    %v600 = vunpack.c.l.b16 %v184
    %v601 = vunpack.c.l.b16 %v185
    %v602 = vunpack.c.l.b16 %v186
    %v603 = vunpack.c.l.b16 %v187
    %v604 = vunpack.c.l.b16 %v188
    %v605 = vunpack.c.l.b16 %v189
    %v606 = vunpack.c.l.b16 %v190
    %v607 = vunpack.c.l.b16 %v191
    %v608 = vunpack.c.l.b16 %v192
    %v609 = vunpack.c.l.b16 %v193
    %v610 = vunpack.c.l.b16 %v194
    %v611 = vunpack.c.l.b16 %v195
    %v612 = vunpack.c.l.b16 %v196
    %v613 = vunpack.c.l.b16 %v197
    %v614 = vunpack.c.l.b16 %v198
    %v615 = vunpack.c.l.b16 %v199
    %v616 = vunpack.c.l.b16 %v200
    %v617 = vunpack.c.l.b16 %v201
    %v618 = vunpack.c.l.b16 %v202
    %v619 = vunpack.c.l.b16 %v203
    %v620 = vunpack.c.l.b16 %v204
    %v621 = vunpack.c.l.b16 %v205
    %v622 = vunpack.c.l.b16 %v206
    %v623 = vunpack.c.l.b16 %v207
    %v624 = vunpack.c.l.b16 %v208
    %v625 = vunpack.c.l.b16 %v209
    %v626 = vunpack.c.l.b16 %v210
    %v627 = vunpack.c.l.b16 %v211
    %v628 = vunpack.c.l.b16 %v212
    %v629 = vunpack.c.l.b16 %v213
    %v630 = vunpack.c.l.b16 %v214
    %v631 = vunpack.c.l.b16 %v215
    %v632 = vunpack.c.l.b16 %v216
    %v633 = vunpack.c.l.b16 %v217
    %v634 = vunpack.c.l.b16 %v218
    %v635 = vunpack.c.l.b16 %v219
    %v636 = vunpack.c.l.b16 %v220
    %v637 = vunpack.c.l.b16 %v221
    %v638 = vunpack.c.l.b16 %v222
    %v639 = vunpack.c.l.b16 %v223
    %v640 = vunpack.c.l.b16 %v224
    %v641 = vunpack.c.l.b16 %v225
    %v642 = vunpack.c.l.b16 %v226
    %v643 = vunpack.c.l.b16 %v227
    %v644 = vunpack.c.l.b16 %v228
    %v645 = vunpack.c.l.b16 %v229
    %v646 = vunpack.c.l.b16 %v230
    %v647 = vunpack.c.l.b16 %v231
    %v648 = vunpack.c.l.b16 %v232
    %v649 = vunpack.c.l.b16 %v233
    %v650 = vunpack.c.l.b16 %v234
    %v651 = vunpack.c.l.b16 %v235
    %v652 = vunpack.c.l.b16 %v236
    %v653 = vpack.c.b16 %v526, %v525
    %v654 = vpack.c.b16 %v528, %v527
    %v655 = vpack.c.b16 %v530, %v529
    %v656 = vpack.c.b16 %v532, %v531
    %v657 = vpack.c.b16 %v534, %v533
    %v658 = vpack.c.b16 %v536, %v535
    %v659 = vpack.c.b16 %v538, %v537
    %v660 = vpack.c.b16 %v540, %v539
    %v661 = vpack.c.b16 %v542, %v541
    %v662 = vpack.c.b16 %v544, %v543
    %v663 = vpack.c.b16 %v546, %v545
    %v664 = vpack.c.b16 %v548, %v547
    %v665 = vpack.c.b16 %v550, %v549
    %v666 = vpack.c.b16 %v552, %v551
    %v667 = vpack.c.b16 %v554, %v553
    %v668 = vpack.c.b16 %v556, %v555
    %v669 = vpack.c.b16 %v558, %v557
    %v670 = vpack.c.b16 %v560, %v559
    %v671 = vpack.c.b16 %v562, %v561
    %v672 = vpack.c.b16 %v564, %v563
    %v673 = vpack.c.b16 %v566, %v565
    %v674 = vpack.c.b16 %v568, %v567
    %v675 = vpack.c.b16 %v570, %v569
    %v676 = vpack.c.b16 %v572, %v571
    %v677 = vpack.c.b16 %v574, %v573
    %v678 = vpack.c.b16 %v576, %v575
    %v679 = vpack.c.b16 %v578, %v577
    %v680 = vpack.c.b16 %v580, %v579
    %v681 = vpack.c.b16 %v582, %v581
    %v682 = vpack.c.b16 %v584, %v583
    %v683 = vpack.c.b16 %v586, %v585
    %v684 = vpack.c.b16 %v588, %v587
    %v685 = vpack.c.b16 %v590, %v589
    %v686 = vpack.c.b16 %v592, %v591
    %v687 = vpack.c.b16 %v594, %v593
    %v688 = vpack.c.b16 %v596, %v595
    %v689 = vpack.c.b16 %v598, %v597
    %v690 = vpack.c.b16 %v600, %v599
    %v691 = vpack.c.b16 %v602, %v601
    %v692 = vpack.c.b16 %v604, %v603
    %v693 = vpack.c.b16 %v606, %v605
    %v694 = vpack.c.b16 %v608, %v607
    %v695 = vpack.c.b16 %v610, %v609
    %v696 = vpack.c.b16 %v612, %v611
    %v697 = vpack.c.b16 %v614, %v613
    %v698 = vpack.c.b16 %v616, %v615
    %v699 = vpack.c.b16 %v618, %v617
    %v700 = vpack.c.b16 %v620, %v619
    %v701 = vpack.c.b16 %v622, %v621
    %v702 = vpack.c.b16 %v624, %v623
    %v703 = vpack.c.b16 %v626, %v625
    %v704 = vpack.c.b16 %v628, %v627
    %v705 = vpack.c.b16 %v630, %v629
    %v706 = vpack.c.b16 %v632, %v631
    %v707 = vpack.c.b16 %v634, %v633
    %v708 = vpack.c.b16 %v636, %v635
    %v709 = vpack.c.b16 %v638, %v637
    %v710 = vpack.c.b16 %v640, %v639
    %v711 = vpack.c.b16 %v642, %v641
    %v712 = vpack.c.b16 %v644, %v643
    %v713 = vpack.c.b16 %v646, %v645
    %v714 = vpack.c.b16 %v648, %v647
    %v715 = vpack.c.b16 %v650, %v649
    %v716 = vpack.c.b16 %v652, %v651
    %781 = vmatprep.subr.bf16.mxu0 0
    %782 = vmatpush1.bf16.msra.mxu0 %v653
    %783 = vmatprep.subr.bf16.mxu0 0
    %784 = vmatpush1.bf16.msra.mxu0 %v654
    %785 = vmatprep.subr.bf16.mxu0 0
    %786 = vmatpush1.bf16.msra.mxu0 %v655
    %787 = vmatprep.subr.bf16.mxu0 0
    %788 = vmatpush1.bf16.msra.mxu0 %v656
    %789 = vmatprep.subr.bf16.mxu0 0
    %790 = vmatpush1.bf16.msra.mxu0 %v657
    %791 = vmatprep.subr.bf16.mxu0 0
    %792 = vmatpush1.bf16.msra.mxu0 %v658
    %793 = vmatprep.subr.bf16.mxu0 0
    %794 = vmatpush1.bf16.msra.mxu0 %v659
    %795 = vmatprep.subr.bf16.mxu0 0
    %796 = vmatpush1.bf16.msra.mxu0 %v660
    %797 = vmatprep.subr.bf16.mxu0 0
    %798 = vmatpush1.bf16.msra.mxu0 %v661
    %799 = vmatprep.subr.bf16.mxu0 0
    %800 = vmatpush1.bf16.msra.mxu0 %v662
    %801 = vmatprep.subr.bf16.mxu0 0
    %802 = vmatpush1.bf16.msra.mxu0 %v663
    %803 = vmatprep.subr.bf16.mxu0 0
    %804 = vmatpush1.bf16.msra.mxu0 %v664
    %805 = vmatprep.subr.bf16.mxu0 0
    %806 = vmatpush1.bf16.msra.mxu0 %v665
    %807 = vmatprep.subr.bf16.mxu0 0
    %808 = vmatpush1.bf16.msra.mxu0 %v666
    %809 = vmatprep.subr.bf16.mxu0 0
    %810 = vmatpush1.bf16.msra.mxu0 %v667
    %811 = vmatprep.subr.bf16.mxu0 0
    %812 = vmatpush1.bf16.msra.mxu0 %v668
    %813 = vmatprep.mubr.bf16.mxu0 %v334
    %814 = vmatmul.mubr.bf16.gmra.mrb[0].mxu0 %v333
    %v815 = vpop.f32.mrb[0].mxu0
    %v816 = vadd.f32 0.0, %v815
    %v817 = vpop.f32.mrb[0].mxu0
    %v818 = vpop.f32.mrb[0].mxu0
    %v819 = vadd.f32 0.0, %v818
    %v820 = vpop.f32.mrb[0].mxu0
    %821 = vmatprep.mubr.bf16.mxu0 %v342
    %822 = vmatmul.mubr.bf16.gmra.mrb[0].mxu0 %v341
    %v823 = vpop.f32.mrb[0].mxu0
    %v824 = vadd.f32 0.0, %v823
    %v825 = vpop.f32.mrb[0].mxu0
    %v826 = vpop.f32.mrb[0].mxu0
    %v827 = vadd.f32 0.0, %v826
    %v828 = vpop.f32.mrb[0].mxu0
    %829 = vmatprep.mubr.bf16.mxu0 %v350
    %830 = vmatmul.mubr.bf16.gmra.mrb[0].mxu0 %v349
    %v831 = vpop.f32.mrb[0].mxu0
    %v832 = vadd.f32 0.0, %v831
    %v833 = vpop.f32.mrb[0].mxu0
    %v834 = vpop.f32.mrb[0].mxu0
    %v835 = vadd.f32 0.0, %v834
    %v836 = vpop.f32.mrb[0].mxu0
    %837 = vmatprep.mubr.bf16.mxu0 %v358
    %838 = vmatmul.mubr.bf16.gmra.mrb[0].mxu0 %v357
    %v839 = vpop.f32.mrb[0].mxu0
    %v840 = vadd.f32 0.0, %v839
    %v841 = vpop.f32.mrb[0].mxu0
    %v842 = vpop.f32.mrb[0].mxu0
    %v843 = vadd.f32 0.0, %v842
    %v844 = vpop.f32.mrb[0].mxu0
    %845 = vdwg.mxu0
    %846 = vmatprep.subr.bf16.mxu0 0
    %847 = vmatpush1.bf16.msra.mxu0 %v669
    %848 = vmatprep.subr.bf16.mxu0 0
    %849 = vmatpush1.bf16.msra.mxu0 %v670
    %850 = vmatprep.subr.bf16.mxu0 0
    %851 = vmatpush1.bf16.msra.mxu0 %v671
    %852 = vmatprep.subr.bf16.mxu0 0
    %853 = vmatpush1.bf16.msra.mxu0 %v672
    %854 = vmatprep.subr.bf16.mxu0 0
    %855 = vmatpush1.bf16.msra.mxu0 %v673
    %856 = vmatprep.subr.bf16.mxu0 0
    %857 = vmatpush1.bf16.msra.mxu0 %v674
    %858 = vmatprep.subr.bf16.mxu0 0
    %859 = vmatpush1.bf16.msra.mxu0 %v675
    %860 = vmatprep.subr.bf16.mxu0 0
    %861 = vmatpush1.bf16.msra.mxu0 %v676
    %862 = vmatprep.subr.bf16.mxu0 0
    %863 = vmatpush1.bf16.msra.mxu0 %v677
    %864 = vmatprep.subr.bf16.mxu0 0
    %865 = vmatpush1.bf16.msra.mxu0 %v678
    %866 = vmatprep.subr.bf16.mxu0 0
    %867 = vmatpush1.bf16.msra.mxu0 %v679
    %868 = vmatprep.subr.bf16.mxu0 0
    %869 = vmatpush1.bf16.msra.mxu0 %v680
    %870 = vmatprep.subr.bf16.mxu0 0
    %871 = vmatpush1.bf16.msra.mxu0 %v681
    %872 = vmatprep.subr.bf16.mxu0 0
    %873 = vmatpush1.bf16.msra.mxu0 %v682
    %874 = vmatprep.subr.bf16.mxu0 0
    %875 = vmatpush1.bf16.msra.mxu0 %v683
    %876 = vmatprep.subr.bf16.mxu0 0
    %877 = vmatpush1.bf16.msra.mxu0 %v684
    %878 = vmatprep.mubr.bf16.mxu0 %v336
    %879 = vmatmul.mubr.bf16.gmra.mrb[0].mxu0 %v335
    %v880 = vpop.f32.mrb[0].mxu0
    %v881 = vadd.f32 %v816, %v880
    %v882 = vpop.f32.mrb[0].mxu0
    %v883 = vpop.f32.mrb[0].mxu0
    %v884 = vadd.f32 %v819, %v883
    %v885 = vpop.f32.mrb[0].mxu0
    %886 = vmatprep.mubr.bf16.mxu0 %v344
    %887 = vmatmul.mubr.bf16.gmra.mrb[0].mxu0 %v343
    %v888 = vpop.f32.mrb[0].mxu0
    %v889 = vadd.f32 %v824, %v888
    %v890 = vpop.f32.mrb[0].mxu0
    %v891 = vpop.f32.mrb[0].mxu0
    %v892 = vadd.f32 %v827, %v891
    %v893 = vpop.f32.mrb[0].mxu0
    %894 = vmatprep.mubr.bf16.mxu0 %v352
    %895 = vmatmul.mubr.bf16.gmra.mrb[0].mxu0 %v351
    %v896 = vpop.f32.mrb[0].mxu0
    %v897 = vadd.f32 %v832, %v896
    %v898 = vpop.f32.mrb[0].mxu0
    %v899 = vpop.f32.mrb[0].mxu0
    %v900 = vadd.f32 %v835, %v899
    %v901 = vpop.f32.mrb[0].mxu0
    %902 = vmatprep.mubr.bf16.mxu0 %v360
    %903 = vmatmul.mubr.bf16.gmra.mrb[0].mxu0 %v359
    %v904 = vpop.f32.mrb[0].mxu0
    %v905 = vadd.f32 %v840, %v904
    %v906 = vpop.f32.mrb[0].mxu0
    %v907 = vpop.f32.mrb[0].mxu0
    %v908 = vadd.f32 %v843, %v907
    %v909 = vpop.f32.mrb[0].mxu0
    %910 = vdwg.mxu0
    %911 = vmatprep.subr.bf16.mxu0 0
    %912 = vmatpush1.bf16.msra.mxu0 %v685
    %913 = vmatprep.subr.bf16.mxu0 0
    %914 = vmatpush1.bf16.msra.mxu0 %v686
    %915 = vmatprep.subr.bf16.mxu0 0
    %916 = vmatpush1.bf16.msra.mxu0 %v687
    %917 = vmatprep.subr.bf16.mxu0 0
    %918 = vmatpush1.bf16.msra.mxu0 %v688
    %919 = vmatprep.subr.bf16.mxu0 0
    %920 = vmatpush1.bf16.msra.mxu0 %v689
    %921 = vmatprep.subr.bf16.mxu0 0
    %922 = vmatpush1.bf16.msra.mxu0 %v690
    %923 = vmatprep.subr.bf16.mxu0 0
    %924 = vmatpush1.bf16.msra.mxu0 %v691
    %925 = vmatprep.subr.bf16.mxu0 0
    %926 = vmatpush1.bf16.msra.mxu0 %v692
    %927 = vmatprep.subr.bf16.mxu0 0
    %928 = vmatpush1.bf16.msra.mxu0 %v693
    %929 = vmatprep.subr.bf16.mxu0 0
    %930 = vmatpush1.bf16.msra.mxu0 %v694
    %931 = vmatprep.subr.bf16.mxu0 0
    %932 = vmatpush1.bf16.msra.mxu0 %v695
    %933 = vmatprep.subr.bf16.mxu0 0
    %934 = vmatpush1.bf16.msra.mxu0 %v696
    %935 = vmatprep.subr.bf16.mxu0 0
    %936 = vmatpush1.bf16.msra.mxu0 %v697
    %937 = vmatprep.subr.bf16.mxu0 0
    %938 = vmatpush1.bf16.msra.mxu0 %v698
    %939 = vmatprep.subr.bf16.mxu0 0
    %940 = vmatpush1.bf16.msra.mxu0 %v699
    %941 = vmatprep.subr.bf16.mxu0 0
    %942 = vmatpush1.bf16.msra.mxu0 %v700
    %943 = vmatprep.mubr.bf16.mxu0 %v338
    %944 = vmatmul.mubr.bf16.gmra.mrb[0].mxu0 %v337
    %v945 = vpop.f32.mrb[0].mxu0
    %v946 = vadd.f32 %v881, %v945
    %v947 = vpop.f32.mrb[0].mxu0
    %v948 = vpop.f32.mrb[0].mxu0
    %v949 = vadd.f32 %v884, %v948
    %v950 = vpop.f32.mrb[0].mxu0
    %951 = vmatprep.mubr.bf16.mxu0 %v346
    %952 = vmatmul.mubr.bf16.gmra.mrb[0].mxu0 %v345
    %v953 = vpop.f32.mrb[0].mxu0
    %v954 = vadd.f32 %v889, %v953
    %v955 = vpop.f32.mrb[0].mxu0
    %v956 = vpop.f32.mrb[0].mxu0
    %v957 = vadd.f32 %v892, %v956
    %v958 = vpop.f32.mrb[0].mxu0
    %959 = vmatprep.mubr.bf16.mxu0 %v354
    %960 = vmatmul.mubr.bf16.gmra.mrb[0].mxu0 %v353
    %v961 = vpop.f32.mrb[0].mxu0
    %v962 = vadd.f32 %v897, %v961
    %v963 = vpop.f32.mrb[0].mxu0
    %v964 = vpop.f32.mrb[0].mxu0
    %v965 = vadd.f32 %v900, %v964
    %v966 = vpop.f32.mrb[0].mxu0
    %967 = vmatprep.mubr.bf16.mxu0 %v362
    %968 = vmatmul.mubr.bf16.gmra.mrb[0].mxu0 %v361
    %v969 = vpop.f32.mrb[0].mxu0
    %v970 = vadd.f32 %v905, %v969
    %v971 = vpop.f32.mrb[0].mxu0
    %v972 = vpop.f32.mrb[0].mxu0
    %v973 = vadd.f32 %v908, %v972
    %v974 = vpop.f32.mrb[0].mxu0
    %975 = vdwg.mxu0
    %976 = vmatprep.subr.bf16.mxu0 0
    %977 = vmatpush1.bf16.msra.mxu0 %v701
    %978 = vmatprep.subr.bf16.mxu0 0
    %979 = vmatpush1.bf16.msra.mxu0 %v702
    %980 = vmatprep.subr.bf16.mxu0 0
    %981 = vmatpush1.bf16.msra.mxu0 %v703
    %982 = vmatprep.subr.bf16.mxu0 0
    %983 = vmatpush1.bf16.msra.mxu0 %v704
    %984 = vmatprep.subr.bf16.mxu0 0
    %985 = vmatpush1.bf16.msra.mxu0 %v705
    %986 = vmatprep.subr.bf16.mxu0 0
    %987 = vmatpush1.bf16.msra.mxu0 %v706
    %988 = vmatprep.subr.bf16.mxu0 0
    %989 = vmatpush1.bf16.msra.mxu0 %v707
    %990 = vmatprep.subr.bf16.mxu0 0
    %991 = vmatpush1.bf16.msra.mxu0 %v708
    %992 = vmatprep.subr.bf16.mxu0 0
    %993 = vmatpush1.bf16.msra.mxu0 %v709
    %994 = vmatprep.subr.bf16.mxu0 0
    %995 = vmatpush1.bf16.msra.mxu0 %v710
    %996 = vmatprep.subr.bf16.mxu0 0
    %997 = vmatpush1.bf16.msra.mxu0 %v711
    %998 = vmatprep.subr.bf16.mxu0 0
    %999 = vmatpush1.bf16.msra.mxu0 %v712
    %1000 = vmatprep.subr.bf16.mxu0 0
    %1001 = vmatpush1.bf16.msra.mxu0 %v713
    %1002 = vmatprep.subr.bf16.mxu0 0
    %1003 = vmatpush1.bf16.msra.mxu0 %v714
    %1004 = vmatprep.subr.bf16.mxu0 0
    %1005 = vmatpush1.bf16.msra.mxu0 %v715
    %1006 = vmatprep.subr.bf16.mxu0 0
    %1007 = vmatpush1.bf16.msra.mxu0 %v716
    %1008 = vmatprep.mubr.bf16.mxu0 %v340
    %1009 = vmatmul.mubr.bf16.gmra.mrb[0].mxu0 %v339
    %v1010 = vpop.f32.mrb[0].mxu0
    %v1011 = vadd.f32 %v946, %v1010
    %v1012 = vpop.f32.mrb[0].mxu0
    %v1013 = vpop.f32.mrb[0].mxu0
    %v1014 = vadd.f32 %v949, %v1013
    %v1015 = vpop.f32.mrb[0].mxu0
    %1016 = vmatprep.mubr.bf16.mxu0 %v348
    %1017 = vmatmul.mubr.bf16.gmra.mrb[0].mxu0 %v347
    %v1018 = vpop.f32.mrb[0].mxu0
    %v1019 = vadd.f32 %v954, %v1018
    %v1020 = vpop.f32.mrb[0].mxu0
    %v1021 = vpop.f32.mrb[0].mxu0
    %v1022 = vadd.f32 %v957, %v1021
    %v1023 = vpop.f32.mrb[0].mxu0
    %1024 = vmatprep.mubr.bf16.mxu0 %v356
    %1025 = vmatmul.mubr.bf16.gmra.mrb[0].mxu0 %v355
    %v1026 = vpop.f32.mrb[0].mxu0
    %v1027 = vadd.f32 %v962, %v1026
    %v1028 = vpop.f32.mrb[0].mxu0
    %v1029 = vpop.f32.mrb[0].mxu0
    %v1030 = vadd.f32 %v965, %v1029
    %v1031 = vpop.f32.mrb[0].mxu0
    %1032 = vmatprep.mubr.bf16.mxu0 %v364
    %1033 = vmatmul.mubr.bf16.gmra.mrb[0].mxu0 %v363
    %v1034 = vpop.f32.mrb[0].mxu0
    %v1035 = vadd.f32 %v970, %v1034
    %v1036 = vpop.f32.mrb[0].mxu0
    %v1037 = vpop.f32.mrb[0].mxu0
    %v1038 = vadd.f32 %v973, %v1037
    %v1039 = vpop.f32.mrb[0].mxu0
    %1040 = vdwg.mxu0
    %v1041 = vmul.f32 %v1011, %v1011
    %v1042 = vmul.f32 %v1014, %v1014
    %v1043 = vmul.f32 %v1019, %v1019
    %v1044 = vmul.f32 %v1022, %v1022
    %v1045 = vmul.f32 %v1027, %v1027
    %v1046 = vmul.f32 %v1030, %v1030
    %v1047 = vmul.f32 %v1035, %v1035
    %v1048 = vmul.f32 %v1038, %v1038
    %1049 = vadd.xlane.f32.xlu0 %v1041
    %v1050 = vpop.xlane.xlu0 %1049
    %1051 = vadd.xlane.f32.xlu0 %v1042
    %v1052 = vpop.xlane.xlu0 %1051
    %1053 = vadd.xlane.f32.xlu0 %v1043
    %v1054 = vpop.xlane.xlu0 %1053
    %1055 = vadd.xlane.f32.xlu0 %v1044
    %v1056 = vpop.xlane.xlu0 %1055
    %1057 = vadd.xlane.f32.xlu0 %v1045
    %v1058 = vpop.xlane.xlu0 %1057
    %1059 = vadd.xlane.f32.xlu0 %v1046
    %v1060 = vpop.xlane.xlu0 %1059
    %1061 = vadd.xlane.f32.xlu0 %v1047
    %v1062 = vpop.xlane.xlu0 %1061
    %1063 = vadd.xlane.f32.xlu0 %v1048
    %v1064 = vpop.xlane.xlu0 %1063
    %v1065 = vadd.f32 %v1050, 1e-12
    %v1066 = vadd.f32 %v1052, 1e-12
    %v1067 = vadd.f32 %v1054, 1e-12
    %v1068 = vadd.f32 %v1056, 1e-12
    %v1069 = vadd.f32 %v1058, 1e-12
    %v1070 = vadd.f32 %v1060, 1e-12
    %v1071 = vadd.f32 %v1062, 1e-12
    %v1072 = vadd.f32 %v1064, 1e-12
    %v1073 = vrsqrt.pop %v1065
    %v1074 = vrsqrt.pop %v1066
    %v1075 = vrsqrt.pop %v1067
    %v1076 = vrsqrt.pop %v1068
    %v1077 = vrsqrt.pop %v1069
    %v1078 = vrsqrt.pop %v1070
    %v1079 = vrsqrt.pop %v1071
    %v1080 = vrsqrt.pop %v1072
    %v1081 = vmul.f32 %v1011, %v1073
    %v1082 = vmul.f32 %v1014, %v1074
    %v1083 = vmul.f32 %v1019, %v1075
    %v1084 = vmul.f32 %v1022, %v1076
    %v1085 = vmul.f32 %v1027, %v1077
    %v1086 = vmul.f32 %v1030, %v1078
    %v1087 = vmul.f32 %v1035, %v1079
    %v1088 = vmul.f32 %v1038, %v1080
    %v1089 = vrot.slane %v1081, 4
    %v1090 = vadd.f32 %v1081, %v1089
    %v1091 = vrot.slane %v1090, 2
    %v1092 = vadd.f32 %v1090, %v1091
    %v1093 = vrot.slane %v1092, 1
    %v1094 = vadd.f32 %v1092, %v1093
    %v1095 = vrot.slane %v1082, 4
    %v1096 = vadd.f32 %v1082, %v1095
    %v1097 = vrot.slane %v1096, 2
    %v1098 = vadd.f32 %v1096, %v1097
    %v1099 = vrot.slane %v1098, 1
    %v1100 = vadd.f32 %v1098, %v1099
    %v1101 = vrot.slane %v1083, 4
    %v1102 = vadd.f32 %v1083, %v1101
    %v1103 = vrot.slane %v1102, 2
    %v1104 = vadd.f32 %v1102, %v1103
    %v1105 = vrot.slane %v1104, 1
    %v1106 = vadd.f32 %v1104, %v1105
    %v1107 = vrot.slane %v1084, 4
    %v1108 = vadd.f32 %v1084, %v1107
    %v1109 = vrot.slane %v1108, 2
    %v1110 = vadd.f32 %v1108, %v1109
    %v1111 = vrot.slane %v1110, 1
    %v1112 = vadd.f32 %v1110, %v1111
    %v1113 = vrot.slane %v1085, 4
    %v1114 = vadd.f32 %v1085, %v1113
    %v1115 = vrot.slane %v1114, 2
    %v1116 = vadd.f32 %v1114, %v1115
    %v1117 = vrot.slane %v1116, 1
    %v1118 = vadd.f32 %v1116, %v1117
    %v1119 = vrot.slane %v1086, 4
    %v1120 = vadd.f32 %v1086, %v1119
    %v1121 = vrot.slane %v1120, 2
    %v1122 = vadd.f32 %v1120, %v1121
    %v1123 = vrot.slane %v1122, 1
    %v1124 = vadd.f32 %v1122, %v1123
    %v1125 = vrot.slane %v1087, 4
    %v1126 = vadd.f32 %v1087, %v1125
    %v1127 = vrot.slane %v1126, 2
    %v1128 = vadd.f32 %v1126, %v1127
    %v1129 = vrot.slane %v1128, 1
    %v1130 = vadd.f32 %v1128, %v1129
    %v1131 = vrot.slane %v1088, 4
    %v1132 = vadd.f32 %v1088, %v1131
    %v1133 = vrot.slane %v1132, 2
    %v1134 = vadd.f32 %v1132, %v1133
    %v1135 = vrot.slane %v1134, 1
    %v1136 = vadd.f32 %v1134, %v1135
    %v1137 = vrcp.pop 8.0
    %v1138 = vmul.f32 %v1094, %v1137
    %v1139 = vmul.f32 %v1100, %v1137
    %v1140 = vmul.f32 %v1106, %v1137
    %v1141 = vmul.f32 %v1112, %v1137
    %v1142 = vmul.f32 %v1118, %v1137
    %v1143 = vmul.f32 %v1124, %v1137
    %v1144 = vmul.f32 %v1130, %v1137
    %v1145 = vmul.f32 %v1136, %v1137
    %v1146 = vmul.f32 %v1138, %v1138
    %v1147 = vmul.f32 %v1139, %v1139
    %v1148 = vmul.f32 %v1140, %v1140
    %v1149 = vmul.f32 %v1141, %v1141
    %v1150 = vmul.f32 %v1142, %v1142
    %v1151 = vmul.f32 %v1143, %v1143
    %v1152 = vmul.f32 %v1144, %v1144
    %v1153 = vmul.f32 %v1145, %v1145
    %vm1162 = vcmask 1041409
    %v1163 = vsel %vm1162, %v1147, %v1146
    %vm1164 = vcmask 1042434
    %v1165 = vsel %vm1164, %v1148, %v1163
    %vm1166 = vcmask 1043459
    %v1167 = vsel %vm1166, %v1149, %v1165
    %vm1168 = vcmask 1044484
    %v1169 = vsel %vm1168, %v1150, %v1167
    %vm1170 = vcmask 1045509
    %v1171 = vsel %vm1170, %v1151, %v1169
    %vm1172 = vcmask 1046534
    %v1173 = vsel %vm1172, %v1152, %v1171
    %vm1174 = vcmask 1047559
    %v1175 = vsel %vm1174, %v1153, %v1173
    %1177 = vadd.xlane.f32.xlu0 %v1175
    %v1178 = vpop.xlane.xlu0 %1177
    %v1179 = vadd.f32 %v1178, 1e-12
    %v1180 = vrsqrt.pop %v1179
    %v1182 = vrot.slane %v1180, 1
    %v1183 = vrot.slane %v1180, 2
    %v1184 = vrot.slane %v1180, 3
    %v1185 = vrot.slane %v1180, 4
    %v1186 = vrot.slane %v1180, 5
    %v1187 = vrot.slane %v1180, 6
    %v1188 = vrot.slane %v1180, 7
    %v1197 = vmul.f32 %v1138, %v1180
    %v1198 = vmul.f32 %v1139, %v1182
    %v1199 = vmul.f32 %v1140, %v1183
    %v1200 = vmul.f32 %v1141, %v1184
    %v1201 = vmul.f32 %v1142, %v1185
    %v1202 = vmul.f32 %v1143, %v1186
    %v1203 = vmul.f32 %v1144, %v1187
    %v1204 = vmul.f32 %v1145, %v1188
    %v1213 = vrot.slane %v1198, 7
    %v1214 = vsel %vm1162, %v1213, %v1197
    %v1215 = vrot.slane %v1199, 6
    %v1216 = vsel %vm1164, %v1215, %v1214
    %v1217 = vrot.slane %v1200, 5
    %v1218 = vsel %vm1166, %v1217, %v1216
    %v1219 = vrot.slane %v1201, 4
    %v1220 = vsel %vm1168, %v1219, %v1218
    %v1221 = vrot.slane %v1202, 3
    %v1222 = vsel %vm1170, %v1221, %v1220
    %v1223 = vrot.slane %v1203, 2
    %v1224 = vsel %vm1172, %v1223, %v1222
    %v1225 = vrot.slane %v1204, 1
    %v1226 = vsel %vm1174, %v1225, %v1224
    %1228 = vst [vmem:[#allocation10] sm:$0xff] %v1226
    %v1229 = vld [vmem:[#allocation5] sm:$0xff]
    %v1230 = vld [vmem:[#allocation5 + $0x8] sm:$0xff]
    %v1231 = vld [vmem:[#allocation5 + $0x10] sm:$0xff]
    %v1232 = vld [vmem:[#allocation5 + $0x18] sm:$0xff]
    %v1233 = vld [vmem:[#allocation5 + $0x20] sm:$0xff]
    %v1234 = vld [vmem:[#allocation5 + $0x28] sm:$0xff]
    %v1235 = vld [vmem:[#allocation5 + $0x30] sm:$0xff]
    %v1236 = vld [vmem:[#allocation5 + $0x38] sm:$0xff]
    %v1237 = vld [vmem:[#allocation5 + $0x40] sm:$0xff]
    %v1238 = vld [vmem:[#allocation5 + $0x48] sm:$0xff]
    %v1239 = vld [vmem:[#allocation5 + $0x50] sm:$0xff]
    %v1240 = vld [vmem:[#allocation5 + $0x58] sm:$0xff]
    %v1241 = vld [vmem:[#allocation5 + $0x60] sm:$0xff]
    %v1242 = vld [vmem:[#allocation5 + $0x68] sm:$0xff]
    %v1243 = vld [vmem:[#allocation5 + $0x70] sm:$0xff]
    %v1244 = vld [vmem:[#allocation5 + $0x78] sm:$0xff]
    %v1245 = vld [vmem:[#allocation5 + $0x80] sm:$0xff]
    %v1246 = vld [vmem:[#allocation5 + $0x88] sm:$0xff]
    %v1247 = vld [vmem:[#allocation5 + $0x90] sm:$0xff]
    %v1248 = vld [vmem:[#allocation5 + $0x98] sm:$0xff]
    %v1249 = vld [vmem:[#allocation5 + $0xa0] sm:$0xff]
    %v1250 = vld [vmem:[#allocation5 + $0xa8] sm:$0xff]
    %v1251 = vld [vmem:[#allocation5 + $0xb0] sm:$0xff]
    %v1252 = vld [vmem:[#allocation5 + $0xb8] sm:$0xff]
    %v1253 = vld [vmem:[#allocation5 + $0xc0] sm:$0xff]
    %v1254 = vld [vmem:[#allocation5 + $0xc8] sm:$0xff]
    %v1255 = vld [vmem:[#allocation5 + $0xd0] sm:$0xff]
    %v1256 = vld [vmem:[#allocation5 + $0xd8] sm:$0xff]
    %v1257 = vld [vmem:[#allocation5 + $0xe0] sm:$0xff]
    %v1258 = vld [vmem:[#allocation5 + $0xe8] sm:$0xff]
    %v1259 = vld [vmem:[#allocation5 + $0xf0] sm:$0xff]
    %v1260 = vld [vmem:[#allocation5 + $0xf8] sm:$0xff]
    %v1261 = vld [vmem:[#allocation8] sm:$0xf]
    %v1262 = vld [vmem:[#allocation8 + $0x4] sm:$0xf]
    %v1263 = vld [vmem:[#allocation8 + $0x8] sm:$0xf]
    %v1264 = vld [vmem:[#allocation8 + $0xc] sm:$0xf]
    %v1265 = vld [vmem:[#allocation8 + $0x10] sm:$0xf]
    %v1266 = vld [vmem:[#allocation8 + $0x14] sm:$0xf]
    %v1267 = vld [vmem:[#allocation8 + $0x18] sm:$0xf]
    %v1268 = vld [vmem:[#allocation8 + $0x1c] sm:$0xf]
    %v1269 = vld [vmem:[#allocation8 + $0x20] sm:$0xf]
    %v1270 = vld [vmem:[#allocation8 + $0x24] sm:$0xf]
    %v1271 = vld [vmem:[#allocation8 + $0x28] sm:$0xf]
    %v1272 = vld [vmem:[#allocation8 + $0x2c] sm:$0xf]
    %v1273 = vld [vmem:[#allocation8 + $0x30] sm:$0xf]
    %v1274 = vld [vmem:[#allocation8 + $0x34] sm:$0xf]
    %v1275 = vld [vmem:[#allocation8 + $0x38] sm:$0xf]
    %v1276 = vld [vmem:[#allocation8 + $0x3c] sm:$0xf]
    %v1277 = vld [vmem:[#allocation8 + $0x40] sm:$0xf]
    %v1278 = vld [vmem:[#allocation8 + $0x44] sm:$0xf]
    %v1279 = vld [vmem:[#allocation8 + $0x48] sm:$0xf]
    %v1280 = vld [vmem:[#allocation8 + $0x4c] sm:$0xf]
    %v1281 = vld [vmem:[#allocation8 + $0x50] sm:$0xf]
    %v1282 = vld [vmem:[#allocation8 + $0x54] sm:$0xf]
    %v1283 = vld [vmem:[#allocation8 + $0x58] sm:$0xf]
    %v1284 = vld [vmem:[#allocation8 + $0x5c] sm:$0xf]
    %v1285 = vld [vmem:[#allocation8 + $0x60] sm:$0xf]
    %v1286 = vld [vmem:[#allocation8 + $0x64] sm:$0xf]
    %v1287 = vld [vmem:[#allocation8 + $0x68] sm:$0xf]
    %v1288 = vld [vmem:[#allocation8 + $0x6c] sm:$0xf]
    %v1289 = vld [vmem:[#allocation8 + $0x70] sm:$0xf]
    %v1290 = vld [vmem:[#allocation8 + $0x74] sm:$0xf]
    %v1291 = vld [vmem:[#allocation8 + $0x78] sm:$0xf]
    %v1292 = vld [vmem:[#allocation8 + $0x7c] sm:$0xf]
    %v1293 = vld [vmem:[#allocation8 + $0x80] sm:$0xf]
    %v1294 = vld [vmem:[#allocation8 + $0x84] sm:$0xf]
    %v1295 = vld [vmem:[#allocation8 + $0x88] sm:$0xf]
    %v1296 = vld [vmem:[#allocation8 + $0x8c] sm:$0xf]
    %v1297 = vld [vmem:[#allocation8 + $0x90] sm:$0xf]
    %v1298 = vld [vmem:[#allocation8 + $0x94] sm:$0xf]
    %v1299 = vld [vmem:[#allocation8 + $0x98] sm:$0xf]
    %v1300 = vld [vmem:[#allocation8 + $0x9c] sm:$0xf]
    %v1301 = vld [vmem:[#allocation8 + $0xa0] sm:$0xf]
    %v1302 = vld [vmem:[#allocation8 + $0xa4] sm:$0xf]
    %v1303 = vld [vmem:[#allocation8 + $0xa8] sm:$0xf]
    %v1304 = vld [vmem:[#allocation8 + $0xac] sm:$0xf]
    %v1305 = vld [vmem:[#allocation8 + $0xb0] sm:$0xf]
    %v1306 = vld [vmem:[#allocation8 + $0xb4] sm:$0xf]
    %v1307 = vld [vmem:[#allocation8 + $0xb8] sm:$0xf]
    %v1308 = vld [vmem:[#allocation8 + $0xbc] sm:$0xf]
    %v1309 = vld [vmem:[#allocation8 + $0xc0] sm:$0xf]
    %v1310 = vld [vmem:[#allocation8 + $0xc4] sm:$0xf]
    %v1311 = vld [vmem:[#allocation8 + $0xc8] sm:$0xf]
    %v1312 = vld [vmem:[#allocation8 + $0xcc] sm:$0xf]
    %v1313 = vld [vmem:[#allocation8 + $0xd0] sm:$0xf]
    %v1314 = vld [vmem:[#allocation8 + $0xd4] sm:$0xf]
    %v1315 = vld [vmem:[#allocation8 + $0xd8] sm:$0xf]
    %v1316 = vld [vmem:[#allocation8 + $0xdc] sm:$0xf]
    %v1317 = vld [vmem:[#allocation8 + $0xe0] sm:$0xf]
    %v1318 = vld [vmem:[#allocation8 + $0xe4] sm:$0xf]
    %v1319 = vld [vmem:[#allocation8 + $0xe8] sm:$0xf]
    %v1320 = vld [vmem:[#allocation8 + $0xec] sm:$0xf]
    %v1321 = vld [vmem:[#allocation8 + $0xf0] sm:$0xf]
    %v1322 = vld [vmem:[#allocation8 + $0xf4] sm:$0xf]
    %v1323 = vld [vmem:[#allocation8 + $0xf8] sm:$0xf]
    %v1324 = vld [vmem:[#allocation8 + $0xfc] sm:$0xf]
    %v1325 = vld [vmem:[#allocation8 + $0x100] sm:$0xf]
    %v1326 = vld [vmem:[#allocation8 + $0x104] sm:$0xf]
    %v1327 = vld [vmem:[#allocation8 + $0x108] sm:$0xf]
    %v1328 = vld [vmem:[#allocation8 + $0x10c] sm:$0xf]
    %v1329 = vld [vmem:[#allocation8 + $0x110] sm:$0xf]
    %v1330 = vld [vmem:[#allocation8 + $0x114] sm:$0xf]
    %v1331 = vld [vmem:[#allocation8 + $0x118] sm:$0xf]
    %v1332 = vld [vmem:[#allocation8 + $0x11c] sm:$0xf]
    %v1333 = vld [vmem:[#allocation8 + $0x120] sm:$0xf]
    %v1334 = vld [vmem:[#allocation8 + $0x124] sm:$0xf]
    %v1335 = vld [vmem:[#allocation8 + $0x128] sm:$0xf]
    %v1336 = vld [vmem:[#allocation8 + $0x12c] sm:$0xf]
    %v1337 = vld [vmem:[#allocation8 + $0x130] sm:$0xf]
    %v1338 = vld [vmem:[#allocation8 + $0x134] sm:$0xf]
    %v1339 = vld [vmem:[#allocation8 + $0x138] sm:$0xf]
    %v1340 = vld [vmem:[#allocation8 + $0x13c] sm:$0xf]
    %v1341 = vld [vmem:[#allocation8 + $0x140] sm:$0xf]
    %v1342 = vld [vmem:[#allocation8 + $0x144] sm:$0xf]
    %v1343 = vld [vmem:[#allocation8 + $0x148] sm:$0xf]
    %v1344 = vld [vmem:[#allocation8 + $0x14c] sm:$0xf]
    %v1345 = vld [vmem:[#allocation8 + $0x150] sm:$0xf]
    %v1346 = vld [vmem:[#allocation8 + $0x154] sm:$0xf]
    %v1347 = vld [vmem:[#allocation8 + $0x158] sm:$0xf]
    %v1348 = vld [vmem:[#allocation8 + $0x15c] sm:$0xf]
    %v1349 = vld [vmem:[#allocation8 + $0x160] sm:$0xf]
    %v1350 = vld [vmem:[#allocation8 + $0x164] sm:$0xf]
    %v1351 = vld [vmem:[#allocation8 + $0x168] sm:$0xf]
    %v1352 = vld [vmem:[#allocation8 + $0x16c] sm:$0xf]
    %v1353 = vld [vmem:[#allocation8 + $0x170] sm:$0xf]
    %v1354 = vld [vmem:[#allocation8 + $0x174] sm:$0xf]
    %v1355 = vld [vmem:[#allocation8 + $0x178] sm:$0xf]
    %v1356 = vld [vmem:[#allocation8 + $0x17c] sm:$0xf]
    %v1357 = vld [vmem:[#allocation8 + $0x180] sm:$0xf]
    %v1358 = vld [vmem:[#allocation8 + $0x184] sm:$0xf]
    %v1359 = vld [vmem:[#allocation8 + $0x188] sm:$0xf]
    %v1360 = vld [vmem:[#allocation8 + $0x18c] sm:$0xf]
    %v1361 = vld [vmem:[#allocation8 + $0x190] sm:$0xf]
    %v1362 = vld [vmem:[#allocation8 + $0x194] sm:$0xf]
    %v1363 = vld [vmem:[#allocation8 + $0x198] sm:$0xf]
    %v1364 = vld [vmem:[#allocation8 + $0x19c] sm:$0xf]
    %v1365 = vld [vmem:[#allocation8 + $0x1a0] sm:$0xf]
    %v1366 = vld [vmem:[#allocation8 + $0x1a4] sm:$0xf]
    %v1367 = vld [vmem:[#allocation8 + $0x1a8] sm:$0xf]
    %v1368 = vld [vmem:[#allocation8 + $0x1ac] sm:$0xf]
    %v1369 = vld [vmem:[#allocation8 + $0x1b0] sm:$0xf]
    %v1370 = vld [vmem:[#allocation8 + $0x1b4] sm:$0xf]
    %v1371 = vld [vmem:[#allocation8 + $0x1b8] sm:$0xf]
    %v1372 = vld [vmem:[#allocation8 + $0x1bc] sm:$0xf]
    %v1373 = vld [vmem:[#allocation8 + $0x1c0] sm:$0xf]
    %v1374 = vld [vmem:[#allocation8 + $0x1c4] sm:$0xf]
    %v1375 = vld [vmem:[#allocation8 + $0x1c8] sm:$0xf]
    %v1376 = vld [vmem:[#allocation8 + $0x1cc] sm:$0xf]
    %v1377 = vld [vmem:[#allocation8 + $0x1d0] sm:$0xf]
    %v1378 = vld [vmem:[#allocation8 + $0x1d4] sm:$0xf]
    %v1379 = vld [vmem:[#allocation8 + $0x1d8] sm:$0xf]
    %v1380 = vld [vmem:[#allocation8 + $0x1dc] sm:$0xf]
    %v1381 = vld [vmem:[#allocation8 + $0x1e0] sm:$0xf]
    %v1382 = vld [vmem:[#allocation8 + $0x1e4] sm:$0xf]
    %v1383 = vld [vmem:[#allocation8 + $0x1e8] sm:$0xf]
    %v1384 = vld [vmem:[#allocation8 + $0x1ec] sm:$0xf]
    %v1385 = vld [vmem:[#allocation8 + $0x1f0] sm:$0xf]
    %v1386 = vld [vmem:[#allocation8 + $0x1f4] sm:$0xf]
    %v1387 = vld [vmem:[#allocation8 + $0x1f8] sm:$0xf]
    %v1388 = vld [vmem:[#allocation8 + $0x1fc] sm:$0xf]
    %v1421 = vunpack.c.l.b16 %v1229
    %v1422 = vunpack.c.h.b16 %v1229
    %v1423 = vunpack.c.l.b16 %v1230
    %v1424 = vunpack.c.h.b16 %v1230
    %v1425 = vunpack.c.l.b16 %v1231
    %v1426 = vunpack.c.h.b16 %v1231
    %v1427 = vunpack.c.l.b16 %v1232
    %v1428 = vunpack.c.h.b16 %v1232
    %v1429 = vunpack.c.l.b16 %v1233
    %v1430 = vunpack.c.h.b16 %v1233
    %v1431 = vunpack.c.l.b16 %v1234
    %v1432 = vunpack.c.h.b16 %v1234
    %v1433 = vunpack.c.l.b16 %v1235
    %v1434 = vunpack.c.h.b16 %v1235
    %v1435 = vunpack.c.l.b16 %v1236
    %v1436 = vunpack.c.h.b16 %v1236
    %v1437 = vunpack.c.l.b16 %v1237
    %v1438 = vunpack.c.h.b16 %v1237
    %v1439 = vunpack.c.l.b16 %v1238
    %v1440 = vunpack.c.h.b16 %v1238
    %v1441 = vunpack.c.l.b16 %v1239
    %v1442 = vunpack.c.h.b16 %v1239
    %v1443 = vunpack.c.l.b16 %v1240
    %v1444 = vunpack.c.h.b16 %v1240
    %v1445 = vunpack.c.l.b16 %v1241
    %v1446 = vunpack.c.h.b16 %v1241
    %v1447 = vunpack.c.l.b16 %v1242
    %v1448 = vunpack.c.h.b16 %v1242
    %v1449 = vunpack.c.l.b16 %v1243
    %v1450 = vunpack.c.h.b16 %v1243
    %v1451 = vunpack.c.l.b16 %v1244
    %v1452 = vunpack.c.h.b16 %v1244
    %v1453 = vunpack.c.l.b16 %v1245
    %v1454 = vunpack.c.h.b16 %v1245
    %v1455 = vunpack.c.l.b16 %v1246
    %v1456 = vunpack.c.h.b16 %v1246
    %v1457 = vunpack.c.l.b16 %v1247
    %v1458 = vunpack.c.h.b16 %v1247
    %v1459 = vunpack.c.l.b16 %v1248
    %v1460 = vunpack.c.h.b16 %v1248
    %v1461 = vunpack.c.l.b16 %v1249
    %v1462 = vunpack.c.h.b16 %v1249
    %v1463 = vunpack.c.l.b16 %v1250
    %v1464 = vunpack.c.h.b16 %v1250
    %v1465 = vunpack.c.l.b16 %v1251
    %v1466 = vunpack.c.h.b16 %v1251
    %v1467 = vunpack.c.l.b16 %v1252
    %v1468 = vunpack.c.h.b16 %v1252
    %v1469 = vunpack.c.l.b16 %v1253
    %v1470 = vunpack.c.h.b16 %v1253
    %v1471 = vunpack.c.l.b16 %v1254
    %v1472 = vunpack.c.h.b16 %v1254
    %v1473 = vunpack.c.l.b16 %v1255
    %v1474 = vunpack.c.h.b16 %v1255
    %v1475 = vunpack.c.l.b16 %v1256
    %v1476 = vunpack.c.h.b16 %v1256
    %v1477 = vunpack.c.l.b16 %v1257
    %v1478 = vunpack.c.h.b16 %v1257
    %v1479 = vunpack.c.l.b16 %v1258
    %v1480 = vunpack.c.h.b16 %v1258
    %v1481 = vunpack.c.l.b16 %v1259
    %v1482 = vunpack.c.h.b16 %v1259
    %v1483 = vunpack.c.l.b16 %v1260
    %v1484 = vunpack.c.h.b16 %v1260
    %v1485 = vpack.c.b16 %v1429, %v1421
    %v1486 = vpack.c.b16 %v1430, %v1422
    %v1487 = vpack.c.b16 %v1431, %v1423
    %v1488 = vpack.c.b16 %v1432, %v1424
    %v1489 = vpack.c.b16 %v1433, %v1425
    %v1490 = vpack.c.b16 %v1434, %v1426
    %v1491 = vpack.c.b16 %v1435, %v1427
    %v1492 = vpack.c.b16 %v1436, %v1428
    %v1493 = vpack.c.b16 %v1445, %v1437
    %v1494 = vpack.c.b16 %v1446, %v1438
    %v1495 = vpack.c.b16 %v1447, %v1439
    %v1496 = vpack.c.b16 %v1448, %v1440
    %v1497 = vpack.c.b16 %v1449, %v1441
    %v1498 = vpack.c.b16 %v1450, %v1442
    %v1499 = vpack.c.b16 %v1451, %v1443
    %v1500 = vpack.c.b16 %v1452, %v1444
    %v1501 = vpack.c.b16 %v1461, %v1453
    %v1502 = vpack.c.b16 %v1462, %v1454
    %v1503 = vpack.c.b16 %v1463, %v1455
    %v1504 = vpack.c.b16 %v1464, %v1456
    %v1505 = vpack.c.b16 %v1465, %v1457
    %v1506 = vpack.c.b16 %v1466, %v1458
    %v1507 = vpack.c.b16 %v1467, %v1459
    %v1508 = vpack.c.b16 %v1468, %v1460
    %v1509 = vpack.c.b16 %v1477, %v1469
    %v1510 = vpack.c.b16 %v1478, %v1470
    %v1511 = vpack.c.b16 %v1479, %v1471
    %v1512 = vpack.c.b16 %v1480, %v1472
    %v1513 = vpack.c.b16 %v1481, %v1473
    %v1514 = vpack.c.b16 %v1482, %v1474
    %v1515 = vpack.c.b16 %v1483, %v1475
    %v1516 = vpack.c.b16 %v1484, %v1476
    %v1677 = vunpack.c.l.b16 %v1261
    %v1678 = vunpack.c.l.b16 %v1262
    %v1679 = vunpack.c.l.b16 %v1263
    %v1680 = vunpack.c.l.b16 %v1264
    %v1681 = vunpack.c.l.b16 %v1265
    %v1682 = vunpack.c.l.b16 %v1266
    %v1683 = vunpack.c.l.b16 %v1267
    %v1684 = vunpack.c.l.b16 %v1268
    %v1685 = vunpack.c.l.b16 %v1269
    %v1686 = vunpack.c.l.b16 %v1270
    %v1687 = vunpack.c.l.b16 %v1271
    %v1688 = vunpack.c.l.b16 %v1272
    %v1689 = vunpack.c.l.b16 %v1273
    %v1690 = vunpack.c.l.b16 %v1274
    %v1691 = vunpack.c.l.b16 %v1275
    %v1692 = vunpack.c.l.b16 %v1276
    %v1693 = vunpack.c.l.b16 %v1277
    %v1694 = vunpack.c.l.b16 %v1278
    %v1695 = vunpack.c.l.b16 %v1279
    %v1696 = vunpack.c.l.b16 %v1280
    %v1697 = vunpack.c.l.b16 %v1281
    %v1698 = vunpack.c.l.b16 %v1282
    %v1699 = vunpack.c.l.b16 %v1283
    %v1700 = vunpack.c.l.b16 %v1284
    %v1701 = vunpack.c.l.b16 %v1285
    %v1702 = vunpack.c.l.b16 %v1286
    %v1703 = vunpack.c.l.b16 %v1287
    %v1704 = vunpack.c.l.b16 %v1288
    %v1705 = vunpack.c.l.b16 %v1289
    %v1706 = vunpack.c.l.b16 %v1290
    %v1707 = vunpack.c.l.b16 %v1291
    %v1708 = vunpack.c.l.b16 %v1292
    %v1709 = vunpack.c.l.b16 %v1293
    %v1710 = vunpack.c.l.b16 %v1294
    %v1711 = vunpack.c.l.b16 %v1295
    %v1712 = vunpack.c.l.b16 %v1296
    %v1713 = vunpack.c.l.b16 %v1297
    %v1714 = vunpack.c.l.b16 %v1298
    %v1715 = vunpack.c.l.b16 %v1299
    %v1716 = vunpack.c.l.b16 %v1300
    %v1717 = vunpack.c.l.b16 %v1301
    %v1718 = vunpack.c.l.b16 %v1302
    %v1719 = vunpack.c.l.b16 %v1303
    %v1720 = vunpack.c.l.b16 %v1304
    %v1721 = vunpack.c.l.b16 %v1305
    %v1722 = vunpack.c.l.b16 %v1306
    %v1723 = vunpack.c.l.b16 %v1307
    %v1724 = vunpack.c.l.b16 %v1308
    %v1725 = vunpack.c.l.b16 %v1309
    %v1726 = vunpack.c.l.b16 %v1310
    %v1727 = vunpack.c.l.b16 %v1311
    %v1728 = vunpack.c.l.b16 %v1312
    %v1729 = vunpack.c.l.b16 %v1313
    %v1730 = vunpack.c.l.b16 %v1314
    %v1731 = vunpack.c.l.b16 %v1315
    %v1732 = vunpack.c.l.b16 %v1316
    %v1733 = vunpack.c.l.b16 %v1317
    %v1734 = vunpack.c.l.b16 %v1318
    %v1735 = vunpack.c.l.b16 %v1319
    %v1736 = vunpack.c.l.b16 %v1320
    %v1737 = vunpack.c.l.b16 %v1321
    %v1738 = vunpack.c.l.b16 %v1322
    %v1739 = vunpack.c.l.b16 %v1323
    %v1740 = vunpack.c.l.b16 %v1324
    %v1741 = vunpack.c.l.b16 %v1325
    %v1742 = vunpack.c.l.b16 %v1326
    %v1743 = vunpack.c.l.b16 %v1327
    %v1744 = vunpack.c.l.b16 %v1328
    %v1745 = vunpack.c.l.b16 %v1329
    %v1746 = vunpack.c.l.b16 %v1330
    %v1747 = vunpack.c.l.b16 %v1331
    %v1748 = vunpack.c.l.b16 %v1332
    %v1749 = vunpack.c.l.b16 %v1333
    %v1750 = vunpack.c.l.b16 %v1334
    %v1751 = vunpack.c.l.b16 %v1335
    %v1752 = vunpack.c.l.b16 %v1336
    %v1753 = vunpack.c.l.b16 %v1337
    %v1754 = vunpack.c.l.b16 %v1338
    %v1755 = vunpack.c.l.b16 %v1339
    %v1756 = vunpack.c.l.b16 %v1340
    %v1757 = vunpack.c.l.b16 %v1341
    %v1758 = vunpack.c.l.b16 %v1342
    %v1759 = vunpack.c.l.b16 %v1343
    %v1760 = vunpack.c.l.b16 %v1344
    %v1761 = vunpack.c.l.b16 %v1345
    %v1762 = vunpack.c.l.b16 %v1346
    %v1763 = vunpack.c.l.b16 %v1347
    %v1764 = vunpack.c.l.b16 %v1348
    %v1765 = vunpack.c.l.b16 %v1349
    %v1766 = vunpack.c.l.b16 %v1350
    %v1767 = vunpack.c.l.b16 %v1351
    %v1768 = vunpack.c.l.b16 %v1352
    %v1769 = vunpack.c.l.b16 %v1353
    %v1770 = vunpack.c.l.b16 %v1354
    %v1771 = vunpack.c.l.b16 %v1355
    %v1772 = vunpack.c.l.b16 %v1356
    %v1773 = vunpack.c.l.b16 %v1357
    %v1774 = vunpack.c.l.b16 %v1358
    %v1775 = vunpack.c.l.b16 %v1359
    %v1776 = vunpack.c.l.b16 %v1360
    %v1777 = vunpack.c.l.b16 %v1361
    %v1778 = vunpack.c.l.b16 %v1362
    %v1779 = vunpack.c.l.b16 %v1363
    %v1780 = vunpack.c.l.b16 %v1364
    %v1781 = vunpack.c.l.b16 %v1365
    %v1782 = vunpack.c.l.b16 %v1366
    %v1783 = vunpack.c.l.b16 %v1367
    %v1784 = vunpack.c.l.b16 %v1368
    %v1785 = vunpack.c.l.b16 %v1369
    %v1786 = vunpack.c.l.b16 %v1370
    %v1787 = vunpack.c.l.b16 %v1371
    %v1788 = vunpack.c.l.b16 %v1372
    %v1789 = vunpack.c.l.b16 %v1373
    %v1790 = vunpack.c.l.b16 %v1374
    %v1791 = vunpack.c.l.b16 %v1375
    %v1792 = vunpack.c.l.b16 %v1376
    %v1793 = vunpack.c.l.b16 %v1377
    %v1794 = vunpack.c.l.b16 %v1378
    %v1795 = vunpack.c.l.b16 %v1379
    %v1796 = vunpack.c.l.b16 %v1380
    %v1797 = vunpack.c.l.b16 %v1381
    %v1798 = vunpack.c.l.b16 %v1382
    %v1799 = vunpack.c.l.b16 %v1383
    %v1800 = vunpack.c.l.b16 %v1384
    %v1801 = vunpack.c.l.b16 %v1385
    %v1802 = vunpack.c.l.b16 %v1386
    %v1803 = vunpack.c.l.b16 %v1387
    %v1804 = vunpack.c.l.b16 %v1388
    %v1805 = vpack.c.b16 %v1678, %v1677
    %v1806 = vpack.c.b16 %v1680, %v1679
    %v1807 = vpack.c.b16 %v1682, %v1681
    %v1808 = vpack.c.b16 %v1684, %v1683
    %v1809 = vpack.c.b16 %v1686, %v1685
    %v1810 = vpack.c.b16 %v1688, %v1687
    %v1811 = vpack.c.b16 %v1690, %v1689
    %v1812 = vpack.c.b16 %v1692, %v1691
    %v1813 = vpack.c.b16 %v1694, %v1693
    %v1814 = vpack.c.b16 %v1696, %v1695
    %v1815 = vpack.c.b16 %v1698, %v1697
    %v1816 = vpack.c.b16 %v1700, %v1699
    %v1817 = vpack.c.b16 %v1702, %v1701
    %v1818 = vpack.c.b16 %v1704, %v1703
    %v1819 = vpack.c.b16 %v1706, %v1705
    %v1820 = vpack.c.b16 %v1708, %v1707
    %v1821 = vpack.c.b16 %v1710, %v1709
    %v1822 = vpack.c.b16 %v1712, %v1711
    %v1823 = vpack.c.b16 %v1714, %v1713
    %v1824 = vpack.c.b16 %v1716, %v1715
    %v1825 = vpack.c.b16 %v1718, %v1717
    %v1826 = vpack.c.b16 %v1720, %v1719
    %v1827 = vpack.c.b16 %v1722, %v1721
    %v1828 = vpack.c.b16 %v1724, %v1723
    %v1829 = vpack.c.b16 %v1726, %v1725
    %v1830 = vpack.c.b16 %v1728, %v1727
    %v1831 = vpack.c.b16 %v1730, %v1729
    %v1832 = vpack.c.b16 %v1732, %v1731
    %v1833 = vpack.c.b16 %v1734, %v1733
    %v1834 = vpack.c.b16 %v1736, %v1735
    %v1835 = vpack.c.b16 %v1738, %v1737
    %v1836 = vpack.c.b16 %v1740, %v1739
    %v1837 = vpack.c.b16 %v1742, %v1741
    %v1838 = vpack.c.b16 %v1744, %v1743
    %v1839 = vpack.c.b16 %v1746, %v1745
    %v1840 = vpack.c.b16 %v1748, %v1747
    %v1841 = vpack.c.b16 %v1750, %v1749
    %v1842 = vpack.c.b16 %v1752, %v1751
    %v1843 = vpack.c.b16 %v1754, %v1753
    %v1844 = vpack.c.b16 %v1756, %v1755
    %v1845 = vpack.c.b16 %v1758, %v1757
    %v1846 = vpack.c.b16 %v1760, %v1759
    %v1847 = vpack.c.b16 %v1762, %v1761
    %v1848 = vpack.c.b16 %v1764, %v1763
    %v1849 = vpack.c.b16 %v1766, %v1765
    %v1850 = vpack.c.b16 %v1768, %v1767
    %v1851 = vpack.c.b16 %v1770, %v1769
    %v1852 = vpack.c.b16 %v1772, %v1771
    %v1853 = vpack.c.b16 %v1774, %v1773
    %v1854 = vpack.c.b16 %v1776, %v1775
    %v1855 = vpack.c.b16 %v1778, %v1777
    %v1856 = vpack.c.b16 %v1780, %v1779
    %v1857 = vpack.c.b16 %v1782, %v1781
    %v1858 = vpack.c.b16 %v1784, %v1783
    %v1859 = vpack.c.b16 %v1786, %v1785
    %v1860 = vpack.c.b16 %v1788, %v1787
    %v1861 = vpack.c.b16 %v1790, %v1789
    %v1862 = vpack.c.b16 %v1792, %v1791
    %v1863 = vpack.c.b16 %v1794, %v1793
    %v1864 = vpack.c.b16 %v1796, %v1795
    %v1865 = vpack.c.b16 %v1798, %v1797
    %v1866 = vpack.c.b16 %v1800, %v1799
    %v1867 = vpack.c.b16 %v1802, %v1801
    %v1868 = vpack.c.b16 %v1804, %v1803
    %1933 = vmatprep.subr.bf16.mxu0 0
    %1934 = vmatpush1.bf16.msra.mxu0 %v1805
    %1935 = vmatprep.subr.bf16.mxu0 0
    %1936 = vmatpush1.bf16.msra.mxu0 %v1806
    %1937 = vmatprep.subr.bf16.mxu0 0
    %1938 = vmatpush1.bf16.msra.mxu0 %v1807
    %1939 = vmatprep.subr.bf16.mxu0 0
    %1940 = vmatpush1.bf16.msra.mxu0 %v1808
    %1941 = vmatprep.subr.bf16.mxu0 0
    %1942 = vmatpush1.bf16.msra.mxu0 %v1809
    %1943 = vmatprep.subr.bf16.mxu0 0
    %1944 = vmatpush1.bf16.msra.mxu0 %v1810
    %1945 = vmatprep.subr.bf16.mxu0 0
    %1946 = vmatpush1.bf16.msra.mxu0 %v1811
    %1947 = vmatprep.subr.bf16.mxu0 0
    %1948 = vmatpush1.bf16.msra.mxu0 %v1812
    %1949 = vmatprep.subr.bf16.mxu0 0
    %1950 = vmatpush1.bf16.msra.mxu0 %v1813
    %1951 = vmatprep.subr.bf16.mxu0 0
    %1952 = vmatpush1.bf16.msra.mxu0 %v1814
    %1953 = vmatprep.subr.bf16.mxu0 0
    %1954 = vmatpush1.bf16.msra.mxu0 %v1815
    %1955 = vmatprep.subr.bf16.mxu0 0
    %1956 = vmatpush1.bf16.msra.mxu0 %v1816
    %1957 = vmatprep.subr.bf16.mxu0 0
    %1958 = vmatpush1.bf16.msra.mxu0 %v1817
    %1959 = vmatprep.subr.bf16.mxu0 0
    %1960 = vmatpush1.bf16.msra.mxu0 %v1818
    %1961 = vmatprep.subr.bf16.mxu0 0
    %1962 = vmatpush1.bf16.msra.mxu0 %v1819
    %1963 = vmatprep.subr.bf16.mxu0 0
    %1964 = vmatpush1.bf16.msra.mxu0 %v1820
    %1965 = vmatprep.mubr.bf16.mxu0 %v1486
    %1966 = vmatmul.mubr.bf16.gmra.mrb[0].mxu0 %v1485
    %v1967 = vpop.f32.mrb[0].mxu0
    %v1968 = vadd.f32 0.0, %v1967
    %v1969 = vpop.f32.mrb[0].mxu0
    %v1970 = vpop.f32.mrb[0].mxu0
    %v1971 = vadd.f32 0.0, %v1970
    %v1972 = vpop.f32.mrb[0].mxu0
    %1973 = vmatprep.mubr.bf16.mxu0 %v1494
    %1974 = vmatmul.mubr.bf16.gmra.mrb[0].mxu0 %v1493
    %v1975 = vpop.f32.mrb[0].mxu0
    %v1976 = vadd.f32 0.0, %v1975
    %v1977 = vpop.f32.mrb[0].mxu0
    %v1978 = vpop.f32.mrb[0].mxu0
    %v1979 = vadd.f32 0.0, %v1978
    %v1980 = vpop.f32.mrb[0].mxu0
    %1981 = vmatprep.mubr.bf16.mxu0 %v1502
    %1982 = vmatmul.mubr.bf16.gmra.mrb[0].mxu0 %v1501
    %v1983 = vpop.f32.mrb[0].mxu0
    %v1984 = vadd.f32 0.0, %v1983
    %v1985 = vpop.f32.mrb[0].mxu0
    %v1986 = vpop.f32.mrb[0].mxu0
    %v1987 = vadd.f32 0.0, %v1986
    %v1988 = vpop.f32.mrb[0].mxu0
    %1989 = vmatprep.mubr.bf16.mxu0 %v1510
    %1990 = vmatmul.mubr.bf16.gmra.mrb[0].mxu0 %v1509
    %v1991 = vpop.f32.mrb[0].mxu0
    %v1992 = vadd.f32 0.0, %v1991
    %v1993 = vpop.f32.mrb[0].mxu0
    %v1994 = vpop.f32.mrb[0].mxu0
    %v1995 = vadd.f32 0.0, %v1994
    %v1996 = vpop.f32.mrb[0].mxu0
    %1997 = vdwg.mxu0
    %1998 = vmatprep.subr.bf16.mxu0 0
    %1999 = vmatpush1.bf16.msra.mxu0 %v1821
    %2000 = vmatprep.subr.bf16.mxu0 0
    %2001 = vmatpush1.bf16.msra.mxu0 %v1822
    %2002 = vmatprep.subr.bf16.mxu0 0
    %2003 = vmatpush1.bf16.msra.mxu0 %v1823
    %2004 = vmatprep.subr.bf16.mxu0 0
    %2005 = vmatpush1.bf16.msra.mxu0 %v1824
    %2006 = vmatprep.subr.bf16.mxu0 0
    %2007 = vmatpush1.bf16.msra.mxu0 %v1825
    %2008 = vmatprep.subr.bf16.mxu0 0
    %2009 = vmatpush1.bf16.msra.mxu0 %v1826
    %2010 = vmatprep.subr.bf16.mxu0 0
    %2011 = vmatpush1.bf16.msra.mxu0 %v1827
    %2012 = vmatprep.subr.bf16.mxu0 0
    %2013 = vmatpush1.bf16.msra.mxu0 %v1828
    %2014 = vmatprep.subr.bf16.mxu0 0
    %2015 = vmatpush1.bf16.msra.mxu0 %v1829
    %2016 = vmatprep.subr.bf16.mxu0 0
    %2017 = vmatpush1.bf16.msra.mxu0 %v1830
    %2018 = vmatprep.subr.bf16.mxu0 0
    %2019 = vmatpush1.bf16.msra.mxu0 %v1831
    %2020 = vmatprep.subr.bf16.mxu0 0
    %2021 = vmatpush1.bf16.msra.mxu0 %v1832
    %2022 = vmatprep.subr.bf16.mxu0 0
    %2023 = vmatpush1.bf16.msra.mxu0 %v1833
    %2024 = vmatprep.subr.bf16.mxu0 0
    %2025 = vmatpush1.bf16.msra.mxu0 %v1834
    %2026 = vmatprep.subr.bf16.mxu0 0
    %2027 = vmatpush1.bf16.msra.mxu0 %v1835
    %2028 = vmatprep.subr.bf16.mxu0 0
    %2029 = vmatpush1.bf16.msra.mxu0 %v1836
    %2030 = vmatprep.mubr.bf16.mxu0 %v1488
    %2031 = vmatmul.mubr.bf16.gmra.mrb[0].mxu0 %v1487
    %v2032 = vpop.f32.mrb[0].mxu0
    %v2033 = vadd.f32 %v1968, %v2032
    %v2034 = vpop.f32.mrb[0].mxu0
    %v2035 = vpop.f32.mrb[0].mxu0
    %v2036 = vadd.f32 %v1971, %v2035
    %v2037 = vpop.f32.mrb[0].mxu0
    %2038 = vmatprep.mubr.bf16.mxu0 %v1496
    %2039 = vmatmul.mubr.bf16.gmra.mrb[0].mxu0 %v1495
    %v2040 = vpop.f32.mrb[0].mxu0
    %v2041 = vadd.f32 %v1976, %v2040
    %v2042 = vpop.f32.mrb[0].mxu0
    %v2043 = vpop.f32.mrb[0].mxu0
    %v2044 = vadd.f32 %v1979, %v2043
    %v2045 = vpop.f32.mrb[0].mxu0
    %2046 = vmatprep.mubr.bf16.mxu0 %v1504
    %2047 = vmatmul.mubr.bf16.gmra.mrb[0].mxu0 %v1503
    %v2048 = vpop.f32.mrb[0].mxu0
    %v2049 = vadd.f32 %v1984, %v2048
    %v2050 = vpop.f32.mrb[0].mxu0
    %v2051 = vpop.f32.mrb[0].mxu0
    %v2052 = vadd.f32 %v1987, %v2051
    %v2053 = vpop.f32.mrb[0].mxu0
    %2054 = vmatprep.mubr.bf16.mxu0 %v1512
    %2055 = vmatmul.mubr.bf16.gmra.mrb[0].mxu0 %v1511
    %v2056 = vpop.f32.mrb[0].mxu0
    %v2057 = vadd.f32 %v1992, %v2056
    %v2058 = vpop.f32.mrb[0].mxu0
    %v2059 = vpop.f32.mrb[0].mxu0
    %v2060 = vadd.f32 %v1995, %v2059
    %v2061 = vpop.f32.mrb[0].mxu0
    %2062 = vdwg.mxu0
    %2063 = vmatprep.subr.bf16.mxu0 0
    %2064 = vmatpush1.bf16.msra.mxu0 %v1837
    %2065 = vmatprep.subr.bf16.mxu0 0
    %2066 = vmatpush1.bf16.msra.mxu0 %v1838
    %2067 = vmatprep.subr.bf16.mxu0 0
    %2068 = vmatpush1.bf16.msra.mxu0 %v1839
    %2069 = vmatprep.subr.bf16.mxu0 0
    %2070 = vmatpush1.bf16.msra.mxu0 %v1840
    %2071 = vmatprep.subr.bf16.mxu0 0
    %2072 = vmatpush1.bf16.msra.mxu0 %v1841
    %2073 = vmatprep.subr.bf16.mxu0 0
    %2074 = vmatpush1.bf16.msra.mxu0 %v1842
    %2075 = vmatprep.subr.bf16.mxu0 0
    %2076 = vmatpush1.bf16.msra.mxu0 %v1843
    %2077 = vmatprep.subr.bf16.mxu0 0
    %2078 = vmatpush1.bf16.msra.mxu0 %v1844
    %2079 = vmatprep.subr.bf16.mxu0 0
    %2080 = vmatpush1.bf16.msra.mxu0 %v1845
    %2081 = vmatprep.subr.bf16.mxu0 0
    %2082 = vmatpush1.bf16.msra.mxu0 %v1846
    %2083 = vmatprep.subr.bf16.mxu0 0
    %2084 = vmatpush1.bf16.msra.mxu0 %v1847
    %2085 = vmatprep.subr.bf16.mxu0 0
    %2086 = vmatpush1.bf16.msra.mxu0 %v1848
    %2087 = vmatprep.subr.bf16.mxu0 0
    %2088 = vmatpush1.bf16.msra.mxu0 %v1849
    %2089 = vmatprep.subr.bf16.mxu0 0
    %2090 = vmatpush1.bf16.msra.mxu0 %v1850
    %2091 = vmatprep.subr.bf16.mxu0 0
    %2092 = vmatpush1.bf16.msra.mxu0 %v1851
    %2093 = vmatprep.subr.bf16.mxu0 0
    %2094 = vmatpush1.bf16.msra.mxu0 %v1852
    %2095 = vmatprep.mubr.bf16.mxu0 %v1490
    %2096 = vmatmul.mubr.bf16.gmra.mrb[0].mxu0 %v1489
    %v2097 = vpop.f32.mrb[0].mxu0
    %v2098 = vadd.f32 %v2033, %v2097
    %v2099 = vpop.f32.mrb[0].mxu0
    %v2100 = vpop.f32.mrb[0].mxu0
    %v2101 = vadd.f32 %v2036, %v2100
    %v2102 = vpop.f32.mrb[0].mxu0
    %2103 = vmatprep.mubr.bf16.mxu0 %v1498
    %2104 = vmatmul.mubr.bf16.gmra.mrb[0].mxu0 %v1497
    %v2105 = vpop.f32.mrb[0].mxu0
    %v2106 = vadd.f32 %v2041, %v2105
    %v2107 = vpop.f32.mrb[0].mxu0
    %v2108 = vpop.f32.mrb[0].mxu0
    %v2109 = vadd.f32 %v2044, %v2108
    %v2110 = vpop.f32.mrb[0].mxu0
    %2111 = vmatprep.mubr.bf16.mxu0 %v1506
    %2112 = vmatmul.mubr.bf16.gmra.mrb[0].mxu0 %v1505
    %v2113 = vpop.f32.mrb[0].mxu0
    %v2114 = vadd.f32 %v2049, %v2113
    %v2115 = vpop.f32.mrb[0].mxu0
    %v2116 = vpop.f32.mrb[0].mxu0
    %v2117 = vadd.f32 %v2052, %v2116
    %v2118 = vpop.f32.mrb[0].mxu0
    %2119 = vmatprep.mubr.bf16.mxu0 %v1514
    %2120 = vmatmul.mubr.bf16.gmra.mrb[0].mxu0 %v1513
    %v2121 = vpop.f32.mrb[0].mxu0
    %v2122 = vadd.f32 %v2057, %v2121
    %v2123 = vpop.f32.mrb[0].mxu0
    %v2124 = vpop.f32.mrb[0].mxu0
    %v2125 = vadd.f32 %v2060, %v2124
    %v2126 = vpop.f32.mrb[0].mxu0
    %2127 = vdwg.mxu0
    %2128 = vmatprep.subr.bf16.mxu0 0
    %2129 = vmatpush1.bf16.msra.mxu0 %v1853
    %2130 = vmatprep.subr.bf16.mxu0 0
    %2131 = vmatpush1.bf16.msra.mxu0 %v1854
    %2132 = vmatprep.subr.bf16.mxu0 0
    %2133 = vmatpush1.bf16.msra.mxu0 %v1855
    %2134 = vmatprep.subr.bf16.mxu0 0
    %2135 = vmatpush1.bf16.msra.mxu0 %v1856
    %2136 = vmatprep.subr.bf16.mxu0 0
    %2137 = vmatpush1.bf16.msra.mxu0 %v1857
    %2138 = vmatprep.subr.bf16.mxu0 0
    %2139 = vmatpush1.bf16.msra.mxu0 %v1858
    %2140 = vmatprep.subr.bf16.mxu0 0
    %2141 = vmatpush1.bf16.msra.mxu0 %v1859
    %2142 = vmatprep.subr.bf16.mxu0 0
    %2143 = vmatpush1.bf16.msra.mxu0 %v1860
    %2144 = vmatprep.subr.bf16.mxu0 0
    %2145 = vmatpush1.bf16.msra.mxu0 %v1861
    %2146 = vmatprep.subr.bf16.mxu0 0
    %2147 = vmatpush1.bf16.msra.mxu0 %v1862
    %2148 = vmatprep.subr.bf16.mxu0 0
    %2149 = vmatpush1.bf16.msra.mxu0 %v1863
    %2150 = vmatprep.subr.bf16.mxu0 0
    %2151 = vmatpush1.bf16.msra.mxu0 %v1864
    %2152 = vmatprep.subr.bf16.mxu0 0
    %2153 = vmatpush1.bf16.msra.mxu0 %v1865
    %2154 = vmatprep.subr.bf16.mxu0 0
    %2155 = vmatpush1.bf16.msra.mxu0 %v1866
    %2156 = vmatprep.subr.bf16.mxu0 0
    %2157 = vmatpush1.bf16.msra.mxu0 %v1867
    %2158 = vmatprep.subr.bf16.mxu0 0
    %2159 = vmatpush1.bf16.msra.mxu0 %v1868
    %2160 = vmatprep.mubr.bf16.mxu0 %v1492
    %2161 = vmatmul.mubr.bf16.gmra.mrb[0].mxu0 %v1491
    %v2162 = vpop.f32.mrb[0].mxu0
    %v2163 = vadd.f32 %v2098, %v2162
    %v2164 = vpop.f32.mrb[0].mxu0
    %v2165 = vpop.f32.mrb[0].mxu0
    %v2166 = vadd.f32 %v2101, %v2165
    %v2167 = vpop.f32.mrb[0].mxu0
    %2168 = vmatprep.mubr.bf16.mxu0 %v1500
    %2169 = vmatmul.mubr.bf16.gmra.mrb[0].mxu0 %v1499
    %v2170 = vpop.f32.mrb[0].mxu0
    %v2171 = vadd.f32 %v2106, %v2170
    %v2172 = vpop.f32.mrb[0].mxu0
    %v2173 = vpop.f32.mrb[0].mxu0
    %v2174 = vadd.f32 %v2109, %v2173
    %v2175 = vpop.f32.mrb[0].mxu0
    %2176 = vmatprep.mubr.bf16.mxu0 %v1508
    %2177 = vmatmul.mubr.bf16.gmra.mrb[0].mxu0 %v1507
    %v2178 = vpop.f32.mrb[0].mxu0
    %v2179 = vadd.f32 %v2114, %v2178
    %v2180 = vpop.f32.mrb[0].mxu0
    %v2181 = vpop.f32.mrb[0].mxu0
    %v2182 = vadd.f32 %v2117, %v2181
    %v2183 = vpop.f32.mrb[0].mxu0
    %2184 = vmatprep.mubr.bf16.mxu0 %v1516
    %2185 = vmatmul.mubr.bf16.gmra.mrb[0].mxu0 %v1515
    %v2186 = vpop.f32.mrb[0].mxu0
    %v2187 = vadd.f32 %v2122, %v2186
    %v2188 = vpop.f32.mrb[0].mxu0
    %v2189 = vpop.f32.mrb[0].mxu0
    %v2190 = vadd.f32 %v2125, %v2189
    %v2191 = vpop.f32.mrb[0].mxu0
    %2192 = vdwg.mxu0
    %v2193 = vmul.f32 %v2163, %v2163
    %v2194 = vmul.f32 %v2166, %v2166
    %v2195 = vmul.f32 %v2171, %v2171
    %v2196 = vmul.f32 %v2174, %v2174
    %v2197 = vmul.f32 %v2179, %v2179
    %v2198 = vmul.f32 %v2182, %v2182
    %v2199 = vmul.f32 %v2187, %v2187
    %v2200 = vmul.f32 %v2190, %v2190
    %2201 = vadd.xlane.f32.xlu0 %v2193
    %v2202 = vpop.xlane.xlu0 %2201
    %2203 = vadd.xlane.f32.xlu0 %v2194
    %v2204 = vpop.xlane.xlu0 %2203
    %2205 = vadd.xlane.f32.xlu0 %v2195
    %v2206 = vpop.xlane.xlu0 %2205
    %2207 = vadd.xlane.f32.xlu0 %v2196
    %v2208 = vpop.xlane.xlu0 %2207
    %2209 = vadd.xlane.f32.xlu0 %v2197
    %v2210 = vpop.xlane.xlu0 %2209
    %2211 = vadd.xlane.f32.xlu0 %v2198
    %v2212 = vpop.xlane.xlu0 %2211
    %2213 = vadd.xlane.f32.xlu0 %v2199
    %v2214 = vpop.xlane.xlu0 %2213
    %2215 = vadd.xlane.f32.xlu0 %v2200
    %v2216 = vpop.xlane.xlu0 %2215
    %v2217 = vadd.f32 %v2202, 1e-12
    %v2218 = vadd.f32 %v2204, 1e-12
    %v2219 = vadd.f32 %v2206, 1e-12
    %v2220 = vadd.f32 %v2208, 1e-12
    %v2221 = vadd.f32 %v2210, 1e-12
    %v2222 = vadd.f32 %v2212, 1e-12
    %v2223 = vadd.f32 %v2214, 1e-12
    %v2224 = vadd.f32 %v2216, 1e-12
    %v2225 = vrsqrt.pop %v2217
    %v2226 = vrsqrt.pop %v2218
    %v2227 = vrsqrt.pop %v2219
    %v2228 = vrsqrt.pop %v2220
    %v2229 = vrsqrt.pop %v2221
    %v2230 = vrsqrt.pop %v2222
    %v2231 = vrsqrt.pop %v2223
    %v2232 = vrsqrt.pop %v2224
    %v2233 = vmul.f32 %v2163, %v2225
    %v2234 = vmul.f32 %v2166, %v2226
    %v2235 = vmul.f32 %v2171, %v2227
    %v2236 = vmul.f32 %v2174, %v2228
    %v2237 = vmul.f32 %v2179, %v2229
    %v2238 = vmul.f32 %v2182, %v2230
    %v2239 = vmul.f32 %v2187, %v2231
    %v2240 = vmul.f32 %v2190, %v2232
    %v2241 = vrot.slane %v2233, 4
    %v2242 = vadd.f32 %v2233, %v2241
    %v2243 = vrot.slane %v2242, 2
    %v2244 = vadd.f32 %v2242, %v2243
    %v2245 = vrot.slane %v2244, 1
    %v2246 = vadd.f32 %v2244, %v2245
    %v2247 = vrot.slane %v2234, 4
    %v2248 = vadd.f32 %v2234, %v2247
    %v2249 = vrot.slane %v2248, 2
    %v2250 = vadd.f32 %v2248, %v2249
    %v2251 = vrot.slane %v2250, 1
    %v2252 = vadd.f32 %v2250, %v2251
    %v2253 = vrot.slane %v2235, 4
    %v2254 = vadd.f32 %v2235, %v2253
    %v2255 = vrot.slane %v2254, 2
    %v2256 = vadd.f32 %v2254, %v2255
    %v2257 = vrot.slane %v2256, 1
    %v2258 = vadd.f32 %v2256, %v2257
    %v2259 = vrot.slane %v2236, 4
    %v2260 = vadd.f32 %v2236, %v2259
    %v2261 = vrot.slane %v2260, 2
    %v2262 = vadd.f32 %v2260, %v2261
    %v2263 = vrot.slane %v2262, 1
    %v2264 = vadd.f32 %v2262, %v2263
    %v2265 = vrot.slane %v2237, 4
    %v2266 = vadd.f32 %v2237, %v2265
    %v2267 = vrot.slane %v2266, 2
    %v2268 = vadd.f32 %v2266, %v2267
    %v2269 = vrot.slane %v2268, 1
    %v2270 = vadd.f32 %v2268, %v2269
    %v2271 = vrot.slane %v2238, 4
    %v2272 = vadd.f32 %v2238, %v2271
    %v2273 = vrot.slane %v2272, 2
    %v2274 = vadd.f32 %v2272, %v2273
    %v2275 = vrot.slane %v2274, 1
    %v2276 = vadd.f32 %v2274, %v2275
    %v2277 = vrot.slane %v2239, 4
    %v2278 = vadd.f32 %v2239, %v2277
    %v2279 = vrot.slane %v2278, 2
    %v2280 = vadd.f32 %v2278, %v2279
    %v2281 = vrot.slane %v2280, 1
    %v2282 = vadd.f32 %v2280, %v2281
    %v2283 = vrot.slane %v2240, 4
    %v2284 = vadd.f32 %v2240, %v2283
    %v2285 = vrot.slane %v2284, 2
    %v2286 = vadd.f32 %v2284, %v2285
    %v2287 = vrot.slane %v2286, 1
    %v2288 = vadd.f32 %v2286, %v2287
    %v2289 = vmul.f32 %v2246, %v1137
    %v2290 = vmul.f32 %v2252, %v1137
    %v2291 = vmul.f32 %v2258, %v1137
    %v2292 = vmul.f32 %v2264, %v1137
    %v2293 = vmul.f32 %v2270, %v1137
    %v2294 = vmul.f32 %v2276, %v1137
    %v2295 = vmul.f32 %v2282, %v1137
    %v2296 = vmul.f32 %v2288, %v1137
    %v2297 = vmul.f32 %v2289, %v2289
    %v2298 = vmul.f32 %v2290, %v2290
    %v2299 = vmul.f32 %v2291, %v2291
    %v2300 = vmul.f32 %v2292, %v2292
    %v2301 = vmul.f32 %v2293, %v2293
    %v2302 = vmul.f32 %v2294, %v2294
    %v2303 = vmul.f32 %v2295, %v2295
    %v2304 = vmul.f32 %v2296, %v2296
    %v2313 = vsel %vm1162, %v2298, %v2297
    %v2314 = vsel %vm1164, %v2299, %v2313
    %v2315 = vsel %vm1166, %v2300, %v2314
    %v2316 = vsel %vm1168, %v2301, %v2315
    %v2317 = vsel %vm1170, %v2302, %v2316
    %v2318 = vsel %vm1172, %v2303, %v2317
    %v2319 = vsel %vm1174, %v2304, %v2318
    %2321 = vadd.xlane.f32.xlu0 %v2319
    %v2322 = vpop.xlane.xlu0 %2321
    %v2323 = vadd.f32 %v2322, 1e-12
    %v2324 = vrsqrt.pop %v2323
    %v2326 = vrot.slane %v2324, 1
    %v2327 = vrot.slane %v2324, 2
    %v2328 = vrot.slane %v2324, 3
    %v2329 = vrot.slane %v2324, 4
    %v2330 = vrot.slane %v2324, 5
    %v2331 = vrot.slane %v2324, 6
    %v2332 = vrot.slane %v2324, 7
    %v2341 = vmul.f32 %v2289, %v2324
    %v2342 = vmul.f32 %v2290, %v2326
    %v2343 = vmul.f32 %v2291, %v2327
    %v2344 = vmul.f32 %v2292, %v2328
    %v2345 = vmul.f32 %v2293, %v2329
    %v2346 = vmul.f32 %v2294, %v2330
    %v2347 = vmul.f32 %v2295, %v2331
    %v2348 = vmul.f32 %v2296, %v2332
    %v2357 = vrot.slane %v2342, 7
    %v2358 = vsel %vm1162, %v2357, %v2341
    %v2359 = vrot.slane %v2343, 6
    %v2360 = vsel %vm1164, %v2359, %v2358
    %v2361 = vrot.slane %v2344, 5
    %v2362 = vsel %vm1166, %v2361, %v2360
    %v2363 = vrot.slane %v2345, 4
    %v2364 = vsel %vm1168, %v2363, %v2362
    %v2365 = vrot.slane %v2346, 3
    %v2366 = vsel %vm1170, %v2365, %v2364
    %v2367 = vrot.slane %v2347, 2
    %v2368 = vsel %vm1172, %v2367, %v2366
    %v2369 = vrot.slane %v2348, 1
    %v2370 = vsel %vm1174, %v2369, %v2368
    %2372 = vst [vmem:[#allocation11] sm:$0xff] %v2370
    // Predicated region
    $region34: #{tpu_custom_call.1} parent=1 // pred_check
      _
    $region35: #{tpu_custom_call.1} parent=1 // pred_check_branch
      %2374 = sbr.rel (0) target = $region37
    $region36: #{tpu_custom_call.1} parent=1 // pred_region
      %s2376 = ssub.s32 128, 128
      %2377 = vsyncadd [#allocation4], %s2376
      %s2379 = sshll.u32 [#allocation10], 4
      %s2380 = int_to_ptr.vmem [resolvable:$true] %s2379
      %2382 = dma.vmem_to_hbm [thread:$0]  %s2380, 128, %s4, [#allocation4]
    $region37: #{tpu_custom_call.1} parent=1 // pred_fallthru
      _
    // Predicated region
    $region38: #{tpu_custom_call.1} parent=1 // pred_check
      _
    $region39: #{tpu_custom_call.1} parent=1 // pred_check_branch
      %2384 = sbr.rel (0) target = $region41
    $region40: #{tpu_custom_call.1} parent=1 // pred_region
      %s2386 = ssub.s32 128, 128
      %2387 = vsyncadd [#allocation12], %s2386
      %s2389 = sshll.u32 [#allocation11], 4
      %s2390 = int_to_ptr.vmem [resolvable:$true] %s2389
      %2392 = dma.vmem_to_hbm [thread:$0]  %s2390, 128, %s5, [#allocation12]
    $region41: #{tpu_custom_call.1} parent=1 // pred_fallthru
      _
    // Predicated region
    $region42: #{tpu_custom_call.1} parent=1 // pred_check
      _
    $region43: #{tpu_custom_call.1} parent=1 // pred_check_branch
      %2394 = sbr.rel (0) target = $region45
    $region44: #{tpu_custom_call.1} parent=1 // pred_region
      %2395 = dma.done [#allocation4], 128
    $region45: #{tpu_custom_call.1} parent=1 // pred_fallthru
      _
    // Predicated region
    $region46: #{tpu_custom_call.1} parent=1 // pred_check
      _
    $region47: #{tpu_custom_call.1} parent=1 // pred_check_branch
      %2397 = sbr.rel (0) target = $region49
    $region48: #{tpu_custom_call.1} parent=1 // pred_region
      %2398 = dma.done [#allocation12], 128
    $region49: #{tpu_custom_call.1} parent=1 // pred_fallthru
      _
    %2399 = vsyncpa [#allocation3], 1
    %2400 = vsyncpa [#allocation6], 1
    %2401 = vsyncpa [#allocation9], 1
    %2402 = vsyncpa [#allocation4], 1
    %2403 = vsyncpa [#allocation12], 1

</llo_original>
